<compile_context>
chip_gen: v7x
topology: tpu7x:2x2x1
jax: 0.10.0
libtpu: 0.0.40
codegen_flags: <defaults>
</compile_context>

<pallas_src>
import functools

import jax
import jax.numpy as jnp
from jax import lax
from jax.experimental import pallas as pl
from jax.experimental.pallas import tpu as pltpu

EPS = 1e-5                       # torch.nn.BatchNorm2d default
VMEM_LIMIT = 64 * 1024 * 1024    # explicit scoped-VMEM budget (fits v5e/v6e/v7x)


def _pick_row_tile(ho, wo, *, target_m=512, max_th=16):
    """Rows per tile: aim for th*wo ~ target_m GEMM rows; prefer exact divisors."""
    cap = max(1, min(ho, max_th, max(1, target_m // max(wo, 1))))
    for d in range(cap, 0, -1):
        if ho % d == 0:
            if 2 * d > cap:            # a divisor close to the cap: exact tiling
                return d
            break
    return cap                         # cdiv tiling + statically-masked tail rows


# ----------------------------- Pallas kernels --------------------------------
def _conv3x3s2_kernel(x_ref, w_ref, y_ref, stats_ref, lhs_ref, *, th, wo, ho):
    """One (batch, row-tile) of a 3x3/stride-2 conv in space-to-depth form.

    x_ref:     (1, hs, ws, C4)    zero-padded space-to-depth input (bf16)
    w_ref:     (4*C4, N)          merged-K GEMM weight (bf16)
    y_ref:     (1, 1, th*wo, N)   pre-BN conv output rows (bf16)
    stats_ref: (1, 1, 2, N)       per-tile BN partial [sum, sum_sq] (f32)
    lhs_ref:   (th*wo, 4*C4)      VMEM scratch for the merged GEMM LHS (bf16)
    """
    t = pl.program_id(1)
    r0 = pl.multiple_of(t * th, th)
    c4 = x_ref.shape[-1]
    mask_tail = (ho % th) != 0           # static: tail masking only when needed

    # Stage the 4 taps of every output row with unit-stride copies.
    for h in range(th):                  # th <= 16, bounded per-iteration liveness
        row0 = x_ref[0, r0 + h, :, :]    # (ws, C4): one load per (h, di)
        row1 = x_ref[0, r0 + h + 1, :, :]
        t00 = row0[0:wo, :]
        t01 = row0[1:wo + 1, :]          # dj=1 tap: shifted view of the same load
        t10 = row1[0:wo, :]
        t11 = row1[1:wo + 1, :]
        if mask_tail:                    # compiled only for the cdiv tail case
            valid = (r0 + h) < ho
            zero = jnp.zeros_like(t00)
            t00 = jnp.where(valid, t00, zero)
            t01 = jnp.where(valid, t01, zero)
            t10 = jnp.where(valid, t10, zero)
            t11 = jnp.where(valid, t11, zero)
        base = h * wo
        lhs_ref[pl.ds(base, wo), pl.ds(0 * c4, c4)] = t00
        lhs_ref[pl.ds(base, wo), pl.ds(1 * c4, c4)] = t01
        lhs_ref[pl.ds(base, wo), pl.ds(2 * c4, c4)] = t10
        lhs_ref[pl.ds(base, wo), pl.ds(3 * c4, c4)] = t11

    # One big MXU GEMM: (th*wo, 4*C4) x (4*C4, N), f32 accumulation.
    acc = jnp.dot(lhs_ref[...], w_ref[...], preferred_element_type=jnp.float32)
    y_bf = acc.astype(jnp.bfloat16)
    y_ref[0, 0] = y_bf

    # Training-mode BatchNorm partial statistics of the values actually stored.
    ys = y_bf.astype(jnp.float32)
    s1 = jnp.sum(ys, axis=0, keepdims=True)
    s2 = jnp.sum(ys * ys, axis=0, keepdims=True)
    stats_ref[0, 0] = jnp.concatenate([s1, s2], axis=0)


def conv3x3s2(x_s2d, w_merged, ho, wo):
    """x_s2d: (B, ho+1, wo+1, C4) bf16;  w_merged: (4*C4, N) bf16.

    Returns (pre-BN conv output (B, ho, wo, N) bf16, BN stats (2, N) f32).
    """
    B, hs, ws, c4 = x_s2d.shape
    k4, n = w_merged.shape
    assert k4 == 4 * c4 and ws == wo + 1 and hs == ho + 1
    th = _pick_row_tile(ho, wo)
    tn = -(-ho // th)
    ho_pad = tn * th
    if ho_pad != ho:                       # only for awkward heights (no th=1 cliff)
        x_s2d = jnp.pad(x_s2d, ((0, 0), (0, ho_pad - ho), (0, 0), (0, 0)))
        hs = ho_pad + 1

    kernel = functools.partial(_conv3x3s2_kernel, th=th, wo=wo, ho=ho)
    y, stats = pl.pallas_call(
        kernel,
        out_shape=(
            jax.ShapeDtypeStruct((B, tn, th * wo, n), jnp.bfloat16),
            jax.ShapeDtypeStruct((B, tn, 2, n), jnp.float32),
        ),
        grid=(B, tn),
        in_specs=[
            # TODO(synk): halo-tile this input (manual DMA, (th+1)-row windows)
            # instead of keeping the whole per-batch image resident; needed for
            # >=384x384 inputs on v7x's 64 MiB VMEM.
            pl.BlockSpec((1, hs, ws, c4), lambda b, t: (b, 0, 0, 0)),
            pl.BlockSpec((k4, n), lambda b, t: (0, 0)),
        ],
        out_specs=(
            pl.BlockSpec((1, 1, th * wo, n), lambda b, t: (b, t, 0, 0)),
            pl.BlockSpec((1, 1, 2, n), lambda b, t: (b, t, 0, 0)),
        ),
        scratch_shapes=[pltpu.VMEM((th * wo, k4), jnp.bfloat16)],
        compiler_params=pltpu.CompilerParams(
            dimension_semantics=("parallel", "parallel"),
            vmem_limit_bytes=VMEM_LIMIT),
    )(x_s2d, w_merged)

    y = y.reshape(B, ho_pad, wo, n)
    if ho_pad != ho:
        y = y[:, :ho]
    return y, stats.sum(axis=(0, 1))


def _bn_relu_proj_kernel(y_ref, scale_ref, shift_ref, w_ref, bias_ref, o_ref):
    """Fused BatchNorm (folded scale/shift) + ReLU + 1x1 conv (GEMM) + bias."""
    x = y_ref[...].astype(jnp.float32) * scale_ref[...] + shift_ref[...]
    x = jnp.maximum(x, 0.0).astype(jnp.bfloat16)
    acc = jnp.dot(x, w_ref[...], preferred_element_type=jnp.float32)
    o_ref[...] = (acc + bias_ref[...]).astype(o_ref.dtype)


def bn_relu_project(y, scale, shift, w, bias, *, m_rows_target=1024):
    """y: (M, C2) bf16; scale/shift: (1, C2) f32; w: (C2, E) bf16; bias: (1, E)."""
    M, c = y.shape
    e = w.shape[-1]
    tm = min(M, m_rows_target)
    return pl.pallas_call(
        _bn_relu_proj_kernel,
        out_shape=jax.ShapeDtypeStruct((M, e), jnp.float32),
        grid=(pl.cdiv(M, tm),),
        in_specs=[
            pl.BlockSpec((tm, c), lambda i: (i, 0)),
            pl.BlockSpec((1, c), lambda i: (0, 0)),
            pl.BlockSpec((1, c), lambda i: (0, 0)),
            pl.BlockSpec((c, e), lambda i: (0, 0)),
            pl.BlockSpec((1, e), lambda i: (0, 0)),
        ],
        out_specs=pl.BlockSpec((tm, e), lambda i: (i, 0)),
        compiler_params=pltpu.CompilerParams(
            dimension_semantics=("parallel",),
            vmem_limit_bytes=VMEM_LIMIT),
    )(y, scale, shift, w, bias)


# ------------------------------- JAX glue -------------------------------------
def _pad_s2d(x_nhwc):
    """Zero-pad H/W by 1 and space-to-depth(2): (B,H,W,C) -> (B,H/2+1,W/2+1,4C)."""
    B, H, W, C = x_nhwc.shape
    xp = jnp.pad(x_nhwc, ((0, 0), (1, 1), (1, 1), (0, 0)))
    hp, wp = H + 2, W + 2
    s = xp.reshape(B, hp // 2, 2, wp // 2, 2, C)
    return s.transpose(0, 1, 3, 2, 4, 5).reshape(B, hp // 2, wp // 2, 4 * C)


def _bn_scale_shift(stats, gamma, beta, count):
    """Fold training-mode BatchNorm into per-channel scale/shift (f32)."""
    mean = stats[0] / count
    var = jnp.maximum(stats[1] / count - mean * mean, 0.0)
    scale = gamma.astype(jnp.float32) * lax.rsqrt(var + EPS)
    shift = beta.astype(jnp.float32) - mean * scale
    return scale, shift


def _conv3x3_to_s2d_weight(w_oihw):
    """(N,C,3,3) OIHW -> (16*C, N) merged-K GEMM weight.

    K ordering is (di, dj, r, s, c), matching the in-kernel LHS staging order
    (tap (di,dj) at K offset (2*di+dj)*4*C; space-to-depth channel order (r,s,c))."""
    n, c, _, _ = w_oihw.shape
    w = jnp.transpose(w_oihw, (2, 3, 1, 0))                   # (ky, kx, C, N)
    w2 = jnp.zeros((2, 2, 2, 2, c, n), w.dtype)               # (di, dj, r, s, C, N)
    tap = {0: (0, 0), 1: (0, 1), 2: (1, 0)}                   # ky/kx -> (block, sub)
    for ky in range(3):
        di, r = tap[ky]
        for kx in range(3):
            dj, s = tap[kx]
            w2 = w2.at[di, dj, r, s].set(w[ky, kx])
    return w2.reshape(16 * c, n)


def prepare_params(params):
    """Pack conv weights into unpadded bf16 GEMM form (done once, outside jit)."""
    e, c2 = params["w3"].shape[:2]
    w3 = params["w3"].reshape(e, c2).T                        # (C2, E)
    return {
        "w1": _conv3x3_to_s2d_weight(params["w1"]).astype(jnp.bfloat16),
        "w2": _conv3x3_to_s2d_weight(params["w2"]).astype(jnp.bfloat16),
        "w3": w3.astype(jnp.bfloat16),
        "b3": params["b3"].astype(jnp.float32).reshape(1, e),
        "g1": params["g1"], "b1": params["b1"],
        "g2": params["g2"], "b2": params["b2"],
    }


def conv_stem_forward(x_nchw, prep):
    """Pallas ConvStem forward: (B, 3, H, W) -> (B, H/4*W/4, embed_dim)."""
    B, C, H, W = x_nchw.shape
    assert C == 3 and H % 4 == 0 and W % 4 == 0

    x = jnp.transpose(x_nchw, (0, 2, 3, 1))                   # NCHW -> NHWC

    # ---- stage 1: conv3x3/s2 (pre-BN output + batch statistics) ----
    s1 = _pad_s2d(x).astype(jnp.bfloat16)                     # (B, H/2+1, W/2+1, 12)
    ho1, wo1 = H // 2, W // 2
    y1, st1 = conv3x3s2(s1, prep["w1"], ho1, wo1)             # (B, ho1, wo1, c1)
    scale1, shift1 = _bn_scale_shift(st1, prep["g1"], prep["b1"], B * ho1 * wo1)

    # ---- stage 2: BN1+ReLU folded into the pad + space-to-depth transform ----
    # TODO(synk): fuse BN1+ReLU+pad+s2d into the stage-2 Pallas kernel (stage 1
    # emitting padded s2d layout directly) to drop this HBM round trip entirely.
    a1 = jnp.maximum(y1.astype(jnp.float32) * scale1 + shift1, 0.0)
    s2 = _pad_s2d(a1).astype(jnp.bfloat16)                    # (B, H/4+1, W/4+1, 4*c1)
    ho2, wo2 = H // 4, W // 4
    y2, st2 = conv3x3s2(s2, prep["w2"], ho2, wo2)             # (B, ho2, wo2, c2)
    scale2, shift2 = _bn_scale_shift(st2, prep["g2"], prep["b2"], B * ho2 * wo2)

    # ---- stage 3: BN2 + ReLU + 1x1 conv + bias, fused in one Pallas kernel ----
    c2 = y2.shape[-1]
    m2 = B * ho2 * wo2
    out = bn_relu_project(y2.reshape(m2, c2),
                          scale2.reshape(1, c2), shift2.reshape(1, c2),
                          prep["w3"], prep["b3"])
    e = out.shape[-1]
    # flatten(2).transpose(1,2) of NCHW == row-major (Ho*Wo) with channels last.
    # norm = nn.Identity() (norm_layer=None).
    return out.reshape(B, ho2 * wo2, e)


# ------------------------------- reference ------------------------------------
def ref_forward(x_nchw, params):
    def conv(x, w, stride, pad):
        return lax.conv_general_dilated(
            x, w, (stride, stride), ((pad, pad), (pad, pad)),
            dimension_numbers=("NCHW", "OIHW", "NCHW"))

    def bn_train(x, g, b):
        mean = x.mean(axis=(0, 2, 3), keepdims=True)
        var = x.var(axis=(0, 2, 3), keepdims=True)   # biased, as in torch fwd
        return (x - mean) / jnp.sqrt(var + EPS) * g[None, :, None, None] \
            + b[None, :, None, None]

    y = jnp.maximum(bn_train(conv(x_nchw, params["w1"], 2, 1),
                             params["g1"], params["b1"]), 0.0)
    y = jnp.maximum(bn_train(conv(y, params["w2"], 2, 1),
                             params["g2"], params["b2"]), 0.0)
    y = conv(y, params["w3"], 1, 0) + params["b3"][None, :, None, None]
    B, E, Ho, Wo = y.shape
    return y.reshape(B, E, Ho * Wo).transpose(0, 2, 1)


# ---------------------------------- main ---------------------------------------
if __name__ == "__main__":
    # Small shapes consistent with the module: in_chans=3 (hardcoded),
    # patch_size=4, embed_dim divisible by 8.
    B, C, H, W = 2, 3, 16, 16
    embed_dim = 32
    c1, c2 = embed_dim // 8, embed_dim // 4   # 4, 8

    key = jax.random.PRNGKey(0)
    k = jax.random.split(key, 9)
    params = {
        "w1": 0.1 * jax.random.normal(k[0], (c1, C, 3, 3), jnp.float32),
        "g1": 1.0 + 0.1 * jax.random.normal(k[1], (c1,), jnp.float32),
        "b1": 0.1 * jax.random.normal(k[2], (c1,), jnp.float32),
        "w2": 0.1 * jax.random.normal(k[3], (c2, c1, 3, 3), jnp.float32),
        "g2": 1.0 + 0.1 * jax.random.normal(k[4], (c2,), jnp.float32),
        "b2": 0.1 * jax.random.normal(k[5], (c2,), jnp.float32),
        "w3": 0.1 * jax.random.normal(k[6], (embed_dim, c2, 1, 1), jnp.float32),
        "b3": 0.1 * jax.random.normal(k[7], (embed_dim,), jnp.float32),
    }
    x = jax.random.normal(k[8], (B, C, H, W), jnp.float32)

    prep = prepare_params(params)             # weight packing, once, outside jit
    fwd = jax.jit(conv_stem_forward)

    out = jax.block_until_ready(fwd(x, prep))
    ref = jax.block_until_ready(ref_forward(x, params))

    assert out.shape == (B, (H // 4) * (W // 4), embed_dim), out.shape
    # bf16 MXU operands (f32 accumulation) -> tolerance looser than pure f32.
    assert jnp.allclose(out, ref, rtol=2e-2, atol=2e-2), \
        float(jnp.max(jnp.abs(out - ref)))
    print("KERNEL_OK")
</pallas_src>

<mosaic_0001>
module attributes {stable_mosaic.version = 11 : i64} {
  func.func @_conv3x3s2_kernel(%arg0: i32, %arg1: i32, %arg2: memref<1x9x9x12xbf16, #tpu.memory_space<vmem>>, %arg3: memref<48x4xbf16, #tpu.memory_space<vmem>>, %arg4: memref<1x1x64x4xbf16, #tpu.memory_space<vmem>>, %arg5: memref<1x1x2x4xf32, #tpu.memory_space<vmem>>, %arg6: memref<64x48xbf16, #tpu.memory_space<vmem>>) attributes {dimension_semantics = [#tpu.dimension_semantics<parallel>, #tpu.dimension_semantics<parallel>], iteration_bounds = array<i64: 2, 1>, scalar_prefetch = 0 : i64, scratch_operands = 1 : i64, tpu.core_type = #tpu.core_type<tc>, window_params = [{transform_indices = @transform_0, window_bounds = array<i64: 1, 9, 9, 12>}, {pipeline_mode = #tpu.pipeline_mode<synchronous>, transform_indices = @transform_1, window_bounds = array<i64: 48, 4>}, {transform_indices = @transform_2, window_bounds = array<i64: 1, 1, 64, 4>}, {transform_indices = @transform_3, window_bounds = array<i64: 1, 1, 2, 4>}]} {
    %c8_i32 = arith.constant 8 : i32
    %0 = arith.muli %arg1, %c8_i32 : i32
    %1 = tpu.assume_multiple %0, 8 : i32
    %c0_i32 = arith.constant 0 : i32
    %2 = arith.addi %1, %c0_i32 : i32
    %c0 = arith.constant 0 : index
    %3 = arith.index_cast %2 : i32 to index
    %c0_0 = arith.constant 0 : index
    %c0_1 = arith.constant 0 : index
    %4 = vector.load %arg2[%c0, %3, %c0_0, %c0_1] : memref<1x9x9x12xbf16, #tpu.memory_space<vmem>>, vector<1x1x9x12xbf16>
    %5 = vector.shape_cast %4 : vector<1x1x9x12xbf16> to vector<9x12xbf16>
    %c0_i32_2 = arith.constant 0 : i32
    %6 = arith.addi %1, %c0_i32_2 : i32
    %c1_i32 = arith.constant 1 : i32
    %7 = arith.addi %6, %c1_i32 : i32
    %c0_3 = arith.constant 0 : index
    %8 = arith.index_cast %7 : i32 to index
    %c0_4 = arith.constant 0 : index
    %c0_5 = arith.constant 0 : index
    %9 = vector.load %arg2[%c0_3, %8, %c0_4, %c0_5] : memref<1x9x9x12xbf16, #tpu.memory_space<vmem>>, vector<1x1x9x12xbf16>
    %10 = vector.shape_cast %9 : vector<1x1x9x12xbf16> to vector<9x12xbf16>
    %11 = vector.extract_strided_slice %5 {offsets = [0, 0], sizes = [8, 12], strides = [1, 1]} : vector<9x12xbf16> to vector<8x12xbf16>
    %12 = vector.extract_strided_slice %5 {offsets = [1, 0], sizes = [8, 12], strides = [1, 1]} : vector<9x12xbf16> to vector<8x12xbf16>
    %13 = vector.extract_strided_slice %10 {offsets = [0, 0], sizes = [8, 12], strides = [1, 1]} : vector<9x12xbf16> to vector<8x12xbf16>
    %14 = vector.extract_strided_slice %10 {offsets = [1, 0], sizes = [8, 12], strides = [1, 1]} : vector<9x12xbf16> to vector<8x12xbf16>
    %c0_6 = arith.constant 0 : index
    %c0_7 = arith.constant 0 : index
    %15 = vector.load %arg6[%c0_6, %c0_7] : memref<64x48xbf16, #tpu.memory_space<vmem>>, vector<8x12xbf16>
    tpu.vector_store %arg6[%c0_6, %c0_7], %11 {strides = array<i32>} : memref<64x48xbf16, #tpu.memory_space<vmem>>, vector<8x12xbf16>,
    %c0_8 = arith.constant 0 : index
    %c12 = arith.constant 12 : index
    %16 = vector.load %arg6[%c0_8, %c12] : memref<64x48xbf16, #tpu.memory_space<vmem>>, vector<8x12xbf16>
    tpu.vector_store %arg6[%c0_8, %c12], %12 {strides = array<i32>} : memref<64x48xbf16, #tpu.memory_space<vmem>>, vector<8x12xbf16>,
    %c0_9 = arith.constant 0 : index
    %c24 = arith.constant 24 : index
    %17 = vector.load %arg6[%c0_9, %c24] : memref<64x48xbf16, #tpu.memory_space<vmem>>, vector<8x12xbf16>
    tpu.vector_store %arg6[%c0_9, %c24], %13 {strides = array<i32>} : memref<64x48xbf16, #tpu.memory_space<vmem>>, vector<8x12xbf16>,
    %c0_10 = arith.constant 0 : index
    %c36 = arith.constant 36 : index
    %18 = vector.load %arg6[%c0_10, %c36] : memref<64x48xbf16, #tpu.memory_space<vmem>>, vector<8x12xbf16>
    tpu.vector_store %arg6[%c0_10, %c36], %14 {strides = array<i32>} : memref<64x48xbf16, #tpu.memory_space<vmem>>, vector<8x12xbf16>,
    %c1_i32_11 = arith.constant 1 : i32
    %19 = arith.addi %1, %c1_i32_11 : i32
    %c0_12 = arith.constant 0 : index
    %20 = arith.index_cast %19 : i32 to index
    %c0_13 = arith.constant 0 : index
    %c0_14 = arith.constant 0 : index
    %21 = vector.load %arg2[%c0_12, %20, %c0_13, %c0_14] : memref<1x9x9x12xbf16, #tpu.memory_space<vmem>>, vector<1x1x9x12xbf16>
    %22 = vector.shape_cast %21 : vector<1x1x9x12xbf16> to vector<9x12xbf16>
    %c1_i32_15 = arith.constant 1 : i32
    %23 = arith.addi %1, %c1_i32_15 : i32
    %c1_i32_16 = arith.constant 1 : i32
    %24 = arith.addi %23, %c1_i32_16 : i32
    %c0_17 = arith.constant 0 : index
    %25 = arith.index_cast %24 : i32 to index
    %c0_18 = arith.constant 0 : index
    %c0_19 = arith.constant 0 : index
    %26 = vector.load %arg2[%c0_17, %25, %c0_18, %c0_19] : memref<1x9x9x12xbf16, #tpu.memory_space<vmem>>, vector<1x1x9x12xbf16>
    %27 = vector.shape_cast %26 : vector<1x1x9x12xbf16> to vector<9x12xbf16>
    %28 = vector.extract_strided_slice %22 {offsets = [0, 0], sizes = [8, 12], strides = [1, 1]} : vector<9x12xbf16> to vector<8x12xbf16>
    %29 = vector.extract_strided_slice %22 {offsets = [1, 0], sizes = [8, 12], strides = [1, 1]} : vector<9x12xbf16> to vector<8x12xbf16>
    %30 = vector.extract_strided_slice %27 {offsets = [0, 0], sizes = [8, 12], strides = [1, 1]} : vector<9x12xbf16> to vector<8x12xbf16>
    %31 = vector.extract_strided_slice %27 {offsets = [1, 0], sizes = [8, 12], strides = [1, 1]} : vector<9x12xbf16> to vector<8x12xbf16>
    %c8 = arith.constant 8 : index
    %c0_20 = arith.constant 0 : index
    %32 = vector.load %arg6[%c8, %c0_20] : memref<64x48xbf16, #tpu.memory_space<vmem>>, vector<8x12xbf16>
    tpu.vector_store %arg6[%c8, %c0_20], %28 {strides = array<i32>} : memref<64x48xbf16, #tpu.memory_space<vmem>>, vector<8x12xbf16>,
    %c8_21 = arith.constant 8 : index
    %c12_22 = arith.constant 12 : index
    %33 = vector.load %arg6[%c8_21, %c12_22] : memref<64x48xbf16, #tpu.memory_space<vmem>>, vector<8x12xbf16>
    tpu.vector_store %arg6[%c8_21, %c12_22], %29 {strides = array<i32>} : memref<64x48xbf16, #tpu.memory_space<vmem>>, vector<8x12xbf16>,
    %c8_23 = arith.constant 8 : index
    %c24_24 = arith.constant 24 : index
    %34 = vector.load %arg6[%c8_23, %c24_24] : memref<64x48xbf16, #tpu.memory_space<vmem>>, vector<8x12xbf16>
    tpu.vector_store %arg6[%c8_23, %c24_24], %30 {strides = array<i32>} : memref<64x48xbf16, #tpu.memory_space<vmem>>, vector<8x12xbf16>,
    %c8_25 = arith.constant 8 : index
    %c36_26 = arith.constant 36 : index
    %35 = vector.load %arg6[%c8_25, %c36_26] : memref<64x48xbf16, #tpu.memory_space<vmem>>, vector<8x12xbf16>
    tpu.vector_store %arg6[%c8_25, %c36_26], %31 {strides = array<i32>} : memref<64x48xbf16, #tpu.memory_space<vmem>>, vector<8x12xbf16>,
    %c2_i32 = arith.constant 2 : i32
    %36 = arith.addi %1, %c2_i32 : i32
    %c0_27 = arith.constant 0 : index
    %37 = arith.index_cast %36 : i32 to index
    %c0_28 = arith.constant 0 : index
    %c0_29 = arith.constant 0 : index
    %38 = vector.load %arg2[%c0_27, %37, %c0_28, %c0_29] : memref<1x9x9x12xbf16, #tpu.memory_space<vmem>>, vector<1x1x9x12xbf16>
    %39 = vector.shape_cast %38 : vector<1x1x9x12xbf16> to vector<9x12xbf16>
    %c2_i32_30 = arith.constant 2 : i32
    %40 = arith.addi %1, %c2_i32_30 : i32
    %c1_i32_31 = arith.constant 1 : i32
    %41 = arith.addi %40, %c1_i32_31 : i32
    %c0_32 = arith.constant 0 : index
    %42 = arith.index_cast %41 : i32 to index
    %c0_33 = arith.constant 0 : index
    %c0_34 = arith.constant 0 : index
    %43 = vector.load %arg2[%c0_32, %42, %c0_33, %c0_34] : memref<1x9x9x12xbf16, #tpu.memory_space<vmem>>, vector<1x1x9x12xbf16>
    %44 = vector.shape_cast %43 : vector<1x1x9x12xbf16> to vector<9x12xbf16>
    %45 = vector.extract_strided_slice %39 {offsets = [0, 0], sizes = [8, 12], strides = [1, 1]} : vector<9x12xbf16> to vector<8x12xbf16>
    %46 = vector.extract_strided_slice %39 {offsets = [1, 0], sizes = [8, 12], strides = [1, 1]} : vector<9x12xbf16> to vector<8x12xbf16>
    %47 = vector.extract_strided_slice %44 {offsets = [0, 0], sizes = [8, 12], strides = [1, 1]} : vector<9x12xbf16> to vector<8x12xbf16>
    %48 = vector.extract_strided_slice %44 {offsets = [1, 0], sizes = [8, 12], strides = [1, 1]} : vector<9x12xbf16> to vector<8x12xbf16>
    %c16 = arith.constant 16 : index
    %c0_35 = arith.constant 0 : index
    %49 = vector.load %arg6[%c16, %c0_35] : memref<64x48xbf16, #tpu.memory_space<vmem>>, vector<8x12xbf16>
    tpu.vector_store %arg6[%c16, %c0_35], %45 {strides = array<i32>} : memref<64x48xbf16, #tpu.memory_space<vmem>>, vector<8x12xbf16>,
    %c16_36 = arith.constant 16 : index
    %c12_37 = arith.constant 12 : index
    %50 = vector.load %arg6[%c16_36, %c12_37] : memref<64x48xbf16, #tpu.memory_space<vmem>>, vector<8x12xbf16>
    tpu.vector_store %arg6[%c16_36, %c12_37], %46 {strides = array<i32>} : memref<64x48xbf16, #tpu.memory_space<vmem>>, vector<8x12xbf16>,
    %c16_38 = arith.constant 16 : index
    %c24_39 = arith.constant 24 : index
    %51 = vector.load %arg6[%c16_38, %c24_39] : memref<64x48xbf16, #tpu.memory_space<vmem>>, vector<8x12xbf16>
    tpu.vector_store %arg6[%c16_38, %c24_39], %47 {strides = array<i32>} : memref<64x48xbf16, #tpu.memory_space<vmem>>, vector<8x12xbf16>,
    %c16_40 = arith.constant 16 : index
    %c36_41 = arith.constant 36 : index
    %52 = vector.load %arg6[%c16_40, %c36_41] : memref<64x48xbf16, #tpu.memory_space<vmem>>, vector<8x12xbf16>
    tpu.vector_store %arg6[%c16_40, %c36_41], %48 {strides = array<i32>} : memref<64x48xbf16, #tpu.memory_space<vmem>>, vector<8x12xbf16>,
    %c3_i32 = arith.constant 3 : i32
    %53 = arith.addi %1, %c3_i32 : i32
    %c0_42 = arith.constant 0 : index
    %54 = arith.index_cast %53 : i32 to index
    %c0_43 = arith.constant 0 : index
    %c0_44 = arith.constant 0 : index
    %55 = vector.load %arg2[%c0_42, %54, %c0_43, %c0_44] : memref<1x9x9x12xbf16, #tpu.memory_space<vmem>>, vector<1x1x9x12xbf16>
    %56 = vector.shape_cast %55 : vector<1x1x9x12xbf16> to vector<9x12xbf16>
    %c3_i32_45 = arith.constant 3 : i32
    %57 = arith.addi %1, %c3_i32_45 : i32
    %c1_i32_46 = arith.constant 1 : i32
    %58 = arith.addi %57, %c1_i32_46 : i32
    %c0_47 = arith.constant 0 : index
    %59 = arith.index_cast %58 : i32 to index
    %c0_48 = arith.constant 0 : index
    %c0_49 = arith.constant 0 : index
    %60 = vector.load %arg2[%c0_47, %59, %c0_48, %c0_49] : memref<1x9x9x12xbf16, #tpu.memory_space<vmem>>, vector<1x1x9x12xbf16>
    %61 = vector.shape_cast %60 : vector<1x1x9x12xbf16> to vector<9x12xbf16>
    %62 = vector.extract_strided_slice %56 {offsets = [0, 0], sizes = [8, 12], strides = [1, 1]} : vector<9x12xbf16> to vector<8x12xbf16>
    %63 = vector.extract_strided_slice %56 {offsets = [1, 0], sizes = [8, 12], strides = [1, 1]} : vector<9x12xbf16> to vector<8x12xbf16>
    %64 = vector.extract_strided_slice %61 {offsets = [0, 0], sizes = [8, 12], strides = [1, 1]} : vector<9x12xbf16> to vector<8x12xbf16>
    %65 = vector.extract_strided_slice %61 {offsets = [1, 0], sizes = [8, 12], strides = [1, 1]} : vector<9x12xbf16> to vector<8x12xbf16>
    %c24_50 = arith.constant 24 : index
    %c0_51 = arith.constant 0 : index
    %66 = vector.load %arg6[%c24_50, %c0_51] : memref<64x48xbf16, #tpu.memory_space<vmem>>, vector<8x12xbf16>
    tpu.vector_store %arg6[%c24_50, %c0_51], %62 {strides = array<i32>} : memref<64x48xbf16, #tpu.memory_space<vmem>>, vector<8x12xbf16>,
    %c24_52 = arith.constant 24 : index
    %c12_53 = arith.constant 12 : index
    %67 = vector.load %arg6[%c24_52, %c12_53] : memref<64x48xbf16, #tpu.memory_space<vmem>>, vector<8x12xbf16>
    tpu.vector_store %arg6[%c24_52, %c12_53], %63 {strides = array<i32>} : memref<64x48xbf16, #tpu.memory_space<vmem>>, vector<8x12xbf16>,
    %c24_54 = arith.constant 24 : index
    %c24_55 = arith.constant 24 : index
    %68 = vector.load %arg6[%c24_54, %c24_55] : memref<64x48xbf16, #tpu.memory_space<vmem>>, vector<8x12xbf16>
    tpu.vector_store %arg6[%c24_54, %c24_55], %64 {strides = array<i32>} : memref<64x48xbf16, #tpu.memory_space<vmem>>, vector<8x12xbf16>,
    %c24_56 = arith.constant 24 : index
    %c36_57 = arith.constant 36 : index
    %69 = vector.load %arg6[%c24_56, %c36_57] : memref<64x48xbf16, #tpu.memory_space<vmem>>, vector<8x12xbf16>
    tpu.vector_store %arg6[%c24_56, %c36_57], %65 {strides = array<i32>} : memref<64x48xbf16, #tpu.memory_space<vmem>>, vector<8x12xbf16>,
    %c4_i32 = arith.constant 4 : i32
    %70 = arith.addi %1, %c4_i32 : i32
    %c0_58 = arith.constant 0 : index
    %71 = arith.index_cast %70 : i32 to index
    %c0_59 = arith.constant 0 : index
    %c0_60 = arith.constant 0 : index
    %72 = vector.load %arg2[%c0_58, %71, %c0_59, %c0_60] : memref<1x9x9x12xbf16, #tpu.memory_space<vmem>>, vector<1x1x9x12xbf16>
    %73 = vector.shape_cast %72 : vector<1x1x9x12xbf16> to vector<9x12xbf16>
    %c4_i32_61 = arith.constant 4 : i32
    %74 = arith.addi %1, %c4_i32_61 : i32
    %c1_i32_62 = arith.constant 1 : i32
    %75 = arith.addi %74, %c1_i32_62 : i32
    %c0_63 = arith.constant 0 : index
    %76 = arith.index_cast %75 : i32 to index
    %c0_64 = arith.constant 0 : index
    %c0_65 = arith.constant 0 : index
    %77 = vector.load %arg2[%c0_63, %76, %c0_64, %c0_65] : memref<1x9x9x12xbf16, #tpu.memory_space<vmem>>, vector<1x1x9x12xbf16>
    %78 = vector.shape_cast %77 : vector<1x1x9x12xbf16> to vector<9x12xbf16>
    %79 = vector.extract_strided_slice %73 {offsets = [0, 0], sizes = [8, 12], strides = [1, 1]} : vector<9x12xbf16> to vector<8x12xbf16>
    %80 = vector.extract_strided_slice %73 {offsets = [1, 0], sizes = [8, 12], strides = [1, 1]} : vector<9x12xbf16> to vector<8x12xbf16>
    %81 = vector.extract_strided_slice %78 {offsets = [0, 0], sizes = [8, 12], strides = [1, 1]} : vector<9x12xbf16> to vector<8x12xbf16>
    %82 = vector.extract_strided_slice %78 {offsets = [1, 0], sizes = [8, 12], strides = [1, 1]} : vector<9x12xbf16> to vector<8x12xbf16>
    %c32 = arith.constant 32 : index
    %c0_66 = arith.constant 0 : index
    %83 = vector.load %arg6[%c32, %c0_66] : memref<64x48xbf16, #tpu.memory_space<vmem>>, vector<8x12xbf16>
    tpu.vector_store %arg6[%c32, %c0_66], %79 {strides = array<i32>} : memref<64x48xbf16, #tpu.memory_space<vmem>>, vector<8x12xbf16>,
    %c32_67 = arith.constant 32 : index
    %c12_68 = arith.constant 12 : index
    %84 = vector.load %arg6[%c32_67, %c12_68] : memref<64x48xbf16, #tpu.memory_space<vmem>>, vector<8x12xbf16>
    tpu.vector_store %arg6[%c32_67, %c12_68], %80 {strides = array<i32>} : memref<64x48xbf16, #tpu.memory_space<vmem>>, vector<8x12xbf16>,
    %c32_69 = arith.constant 32 : index
    %c24_70 = arith.constant 24 : index
    %85 = vector.load %arg6[%c32_69, %c24_70] : memref<64x48xbf16, #tpu.memory_space<vmem>>, vector<8x12xbf16>
    tpu.vector_store %arg6[%c32_69, %c24_70], %81 {strides = array<i32>} : memref<64x48xbf16, #tpu.memory_space<vmem>>, vector<8x12xbf16>,
    %c32_71 = arith.constant 32 : index
    %c36_72 = arith.constant 36 : index
    %86 = vector.load %arg6[%c32_71, %c36_72] : memref<64x48xbf16, #tpu.memory_space<vmem>>, vector<8x12xbf16>
    tpu.vector_store %arg6[%c32_71, %c36_72], %82 {strides = array<i32>} : memref<64x48xbf16, #tpu.memory_space<vmem>>, vector<8x12xbf16>,
    %c5_i32 = arith.constant 5 : i32
    %87 = arith.addi %1, %c5_i32 : i32
    %c0_73 = arith.constant 0 : index
    %88 = arith.index_cast %87 : i32 to index
    %c0_74 = arith.constant 0 : index
    %c0_75 = arith.constant 0 : index
    %89 = vector.load %arg2[%c0_73, %88, %c0_74, %c0_75] : memref<1x9x9x12xbf16, #tpu.memory_space<vmem>>, vector<1x1x9x12xbf16>
    %90 = vector.shape_cast %89 : vector<1x1x9x12xbf16> to vector<9x12xbf16>
    %c5_i32_76 = arith.constant 5 : i32
    %91 = arith.addi %1, %c5_i32_76 : i32
    %c1_i32_77 = arith.constant 1 : i32
    %92 = arith.addi %91, %c1_i32_77 : i32
    %c0_78 = arith.constant 0 : index
    %93 = arith.index_cast %92 : i32 to index
    %c0_79 = arith.constant 0 : index
    %c0_80 = arith.constant 0 : index
    %94 = vector.load %arg2[%c0_78, %93, %c0_79, %c0_80] : memref<1x9x9x12xbf16, #tpu.memory_space<vmem>>, vector<1x1x9x12xbf16>
    %95 = vector.shape_cast %94 : vector<1x1x9x12xbf16> to vector<9x12xbf16>
    %96 = vector.extract_strided_slice %90 {offsets = [0, 0], sizes = [8, 12], strides = [1, 1]} : vector<9x12xbf16> to vector<8x12xbf16>
    %97 = vector.extract_strided_slice %90 {offsets = [1, 0], sizes = [8, 12], strides = [1, 1]} : vector<9x12xbf16> to vector<8x12xbf16>
    %98 = vector.extract_strided_slice %95 {offsets = [0, 0], sizes = [8, 12], strides = [1, 1]} : vector<9x12xbf16> to vector<8x12xbf16>
    %99 = vector.extract_strided_slice %95 {offsets = [1, 0], sizes = [8, 12], strides = [1, 1]} : vector<9x12xbf16> to vector<8x12xbf16>
    %c40 = arith.constant 40 : index
    %c0_81 = arith.constant 0 : index
    %100 = vector.load %arg6[%c40, %c0_81] : memref<64x48xbf16, #tpu.memory_space<vmem>>, vector<8x12xbf16>
    tpu.vector_store %arg6[%c40, %c0_81], %96 {strides = array<i32>} : memref<64x48xbf16, #tpu.memory_space<vmem>>, vector<8x12xbf16>,
    %c40_82 = arith.constant 40 : index
    %c12_83 = arith.constant 12 : index
    %101 = vector.load %arg6[%c40_82, %c12_83] : memref<64x48xbf16, #tpu.memory_space<vmem>>, vector<8x12xbf16>
    tpu.vector_store %arg6[%c40_82, %c12_83], %97 {strides = array<i32>} : memref<64x48xbf16, #tpu.memory_space<vmem>>, vector<8x12xbf16>,
    %c40_84 = arith.constant 40 : index
    %c24_85 = arith.constant 24 : index
    %102 = vector.load %arg6[%c40_84, %c24_85] : memref<64x48xbf16, #tpu.memory_space<vmem>>, vector<8x12xbf16>
    tpu.vector_store %arg6[%c40_84, %c24_85], %98 {strides = array<i32>} : memref<64x48xbf16, #tpu.memory_space<vmem>>, vector<8x12xbf16>,
    %c40_86 = arith.constant 40 : index
    %c36_87 = arith.constant 36 : index
    %103 = vector.load %arg6[%c40_86, %c36_87] : memref<64x48xbf16, #tpu.memory_space<vmem>>, vector<8x12xbf16>
    tpu.vector_store %arg6[%c40_86, %c36_87], %99 {strides = array<i32>} : memref<64x48xbf16, #tpu.memory_space<vmem>>, vector<8x12xbf16>,
    %c6_i32 = arith.constant 6 : i32
    %104 = arith.addi %1, %c6_i32 : i32
    %c0_88 = arith.constant 0 : index
    %105 = arith.index_cast %104 : i32 to index
    %c0_89 = arith.constant 0 : index
    %c0_90 = arith.constant 0 : index
    %106 = vector.load %arg2[%c0_88, %105, %c0_89, %c0_90] : memref<1x9x9x12xbf16, #tpu.memory_space<vmem>>, vector<1x1x9x12xbf16>
    %107 = vector.shape_cast %106 : vector<1x1x9x12xbf16> to vector<9x12xbf16>
    %c6_i32_91 = arith.constant 6 : i32
    %108 = arith.addi %1, %c6_i32_91 : i32
    %c1_i32_92 = arith.constant 1 : i32
    %109 = arith.addi %108, %c1_i32_92 : i32
    %c0_93 = arith.constant 0 : index
    %110 = arith.index_cast %109 : i32 to index
    %c0_94 = arith.constant 0 : index
    %c0_95 = arith.constant 0 : index
    %111 = vector.load %arg2[%c0_93, %110, %c0_94, %c0_95] : memref<1x9x9x12xbf16, #tpu.memory_space<vmem>>, vector<1x1x9x12xbf16>
    %112 = vector.shape_cast %111 : vector<1x1x9x12xbf16> to vector<9x12xbf16>
    %113 = vector.extract_strided_slice %107 {offsets = [0, 0], sizes = [8, 12], strides = [1, 1]} : vector<9x12xbf16> to vector<8x12xbf16>
    %114 = vector.extract_strided_slice %107 {offsets = [1, 0], sizes = [8, 12], strides = [1, 1]} : vector<9x12xbf16> to vector<8x12xbf16>
    %115 = vector.extract_strided_slice %112 {offsets = [0, 0], sizes = [8, 12], strides = [1, 1]} : vector<9x12xbf16> to vector<8x12xbf16>
    %116 = vector.extract_strided_slice %112 {offsets = [1, 0], sizes = [8, 12], strides = [1, 1]} : vector<9x12xbf16> to vector<8x12xbf16>
    %c48 = arith.constant 48 : index
    %c0_96 = arith.constant 0 : index
    %117 = vector.load %arg6[%c48, %c0_96] : memref<64x48xbf16, #tpu.memory_space<vmem>>, vector<8x12xbf16>
    tpu.vector_store %arg6[%c48, %c0_96], %113 {strides = array<i32>} : memref<64x48xbf16, #tpu.memory_space<vmem>>, vector<8x12xbf16>,
    %c48_97 = arith.constant 48 : index
    %c12_98 = arith.constant 12 : index
    %118 = vector.load %arg6[%c48_97, %c12_98] : memref<64x48xbf16, #tpu.memory_space<vmem>>, vector<8x12xbf16>
    tpu.vector_store %arg6[%c48_97, %c12_98], %114 {strides = array<i32>} : memref<64x48xbf16, #tpu.memory_space<vmem>>, vector<8x12xbf16>,
    %c48_99 = arith.constant 48 : index
    %c24_100 = arith.constant 24 : index
    %119 = vector.load %arg6[%c48_99, %c24_100] : memref<64x48xbf16, #tpu.memory_space<vmem>>, vector<8x12xbf16>
    tpu.vector_store %arg6[%c48_99, %c24_100], %115 {strides = array<i32>} : memref<64x48xbf16, #tpu.memory_space<vmem>>, vector<8x12xbf16>,
    %c48_101 = arith.constant 48 : index
    %c36_102 = arith.constant 36 : index
    %120 = vector.load %arg6[%c48_101, %c36_102] : memref<64x48xbf16, #tpu.memory_space<vmem>>, vector<8x12xbf16>
    tpu.vector_store %arg6[%c48_101, %c36_102], %116 {strides = array<i32>} : memref<64x48xbf16, #tpu.memory_space<vmem>>, vector<8x12xbf16>,
    %c7_i32 = arith.constant 7 : i32
    %121 = arith.addi %1, %c7_i32 : i32
    %c0_103 = arith.constant 0 : index
    %122 = arith.index_cast %121 : i32 to index
    %c0_104 = arith.constant 0 : index
    %c0_105 = arith.constant 0 : index
    %123 = vector.load %arg2[%c0_103, %122, %c0_104, %c0_105] : memref<1x9x9x12xbf16, #tpu.memory_space<vmem>>, vector<1x1x9x12xbf16>
    %124 = vector.shape_cast %123 : vector<1x1x9x12xbf16> to vector<9x12xbf16>
    %c7_i32_106 = arith.constant 7 : i32
    %125 = arith.addi %1, %c7_i32_106 : i32
    %c1_i32_107 = arith.constant 1 : i32
    %126 = arith.addi %125, %c1_i32_107 : i32
    %c0_108 = arith.constant 0 : index
    %127 = arith.index_cast %126 : i32 to index
    %c0_109 = arith.constant 0 : index
    %c0_110 = arith.constant 0 : index
    %128 = vector.load %arg2[%c0_108, %127, %c0_109, %c0_110] : memref<1x9x9x12xbf16, #tpu.memory_space<vmem>>, vector<1x1x9x12xbf16>
    %129 = vector.shape_cast %128 : vector<1x1x9x12xbf16> to vector<9x12xbf16>
    %130 = vector.extract_strided_slice %124 {offsets = [0, 0], sizes = [8, 12], strides = [1, 1]} : vector<9x12xbf16> to vector<8x12xbf16>
    %131 = vector.extract_strided_slice %124 {offsets = [1, 0], sizes = [8, 12], strides = [1, 1]} : vector<9x12xbf16> to vector<8x12xbf16>
    %132 = vector.extract_strided_slice %129 {offsets = [0, 0], sizes = [8, 12], strides = [1, 1]} : vector<9x12xbf16> to vector<8x12xbf16>
    %133 = vector.extract_strided_slice %129 {offsets = [1, 0], sizes = [8, 12], strides = [1, 1]} : vector<9x12xbf16> to vector<8x12xbf16>
    %c56 = arith.constant 56 : index
    %c0_111 = arith.constant 0 : index
    %134 = vector.load %arg6[%c56, %c0_111] : memref<64x48xbf16, #tpu.memory_space<vmem>>, vector<8x12xbf16>
    tpu.vector_store %arg6[%c56, %c0_111], %130 {strides = array<i32>} : memref<64x48xbf16, #tpu.memory_space<vmem>>, vector<8x12xbf16>,
    %c56_112 = arith.constant 56 : index
    %c12_113 = arith.constant 12 : index
    %135 = vector.load %arg6[%c56_112, %c12_113] : memref<64x48xbf16, #tpu.memory_space<vmem>>, vector<8x12xbf16>
    tpu.vector_store %arg6[%c56_112, %c12_113], %131 {strides = array<i32>} : memref<64x48xbf16, #tpu.memory_space<vmem>>, vector<8x12xbf16>,
    %c56_114 = arith.constant 56 : index
    %c24_115 = arith.constant 24 : index
    %136 = vector.load %arg6[%c56_114, %c24_115] : memref<64x48xbf16, #tpu.memory_space<vmem>>, vector<8x12xbf16>
    tpu.vector_store %arg6[%c56_114, %c24_115], %132 {strides = array<i32>} : memref<64x48xbf16, #tpu.memory_space<vmem>>, vector<8x12xbf16>,
    %c56_116 = arith.constant 56 : index
    %c36_117 = arith.constant 36 : index
    %137 = vector.load %arg6[%c56_116, %c36_117] : memref<64x48xbf16, #tpu.memory_space<vmem>>, vector<8x12xbf16>
    tpu.vector_store %arg6[%c56_116, %c36_117], %133 {strides = array<i32>} : memref<64x48xbf16, #tpu.memory_space<vmem>>, vector<8x12xbf16>,
    %c0_118 = arith.constant 0 : index
    %c0_119 = arith.constant 0 : index
    %138 = vector.load %arg6[%c0_118, %c0_119] : memref<64x48xbf16, #tpu.memory_space<vmem>>, vector<64x48xbf16>
    %c0_120 = arith.constant 0 : index
    %c0_121 = arith.constant 0 : index
    %139 = vector.load %arg3[%c0_120, %c0_121] : memref<48x4xbf16, #tpu.memory_space<vmem>>, vector<48x4xbf16>
    %cst = arith.constant dense<0.000000e+00> : vector<64x4xf32>
    %140 = tpu.matmul %138, %139, %cst {dimension_numbers = #tpu.dot_dimension_numbers<[1], [0], [0], [1], [0, 0, 1, 1], [], []>} : vector<64x48xbf16>, vector<48x4xbf16>, vector<64x4xf32> -> vector<64x4xf32>
    %141 = arith.truncf %140 : vector<64x4xf32> to vector<64x4xbf16>
    %c0_122 = arith.constant 0 : index
    %c0_123 = arith.constant 0 : index
    %c0_124 = arith.constant 0 : index
    %c0_125 = arith.constant 0 : index
    %142 = vector.load %arg4[%c0_122, %c0_123, %c0_124, %c0_125] : memref<1x1x64x4xbf16, #tpu.memory_space<vmem>>, vector<1x1x64x4xbf16>
    %143 = vector.shape_cast %142 : vector<1x1x64x4xbf16> to vector<64x4xbf16>
    %144 = vector.shape_cast %141 : vector<64x4xbf16> to vector<1x1x64x4xbf16>
    tpu.vector_store %arg4[%c0_122, %c0_123, %c0_124, %c0_125], %144 {strides = array<i32>} : memref<1x1x64x4xbf16, #tpu.memory_space<vmem>>, vector<1x1x64x4xbf16>,
    %145 = arith.extf %141 : vector<64x4xbf16> to vector<64x4xf32>
    %cst_126 = arith.constant dense<0.000000e+00> : vector<4xf32>
    %146 = vector.multi_reduction <add>, %145, %cst_126 [0] : vector<64x4xf32> to vector<4xf32>
    %147 = vector.shape_cast %146 : vector<4xf32> to vector<1x4xf32>
    %148 = arith.mulf %145, %145 : vector<64x4xf32>
    %cst_127 = arith.constant dense<0.000000e+00> : vector<4xf32>
    %149 = vector.multi_reduction <add>, %148, %cst_127 [0] : vector<64x4xf32> to vector<4xf32>
    %150 = vector.shape_cast %149 : vector<4xf32> to vector<1x4xf32>
    %151 = tpu.concatenate %147, %150 in 0 : vector<1x4xf32>, vector<1x4xf32> -> vector<2x4xf32>
    %c0_128 = arith.constant 0 : index
    %c0_129 = arith.constant 0 : index
    %c0_130 = arith.constant 0 : index
    %c0_131 = arith.constant 0 : index
    %152 = vector.load %arg5[%c0_128, %c0_129, %c0_130, %c0_131] : memref<1x1x2x4xf32, #tpu.memory_space<vmem>>, vector<1x1x2x4xf32>
    %153 = vector.shape_cast %152 : vector<1x1x2x4xf32> to vector<2x4xf32>
    %154 = vector.shape_cast %151 : vector<2x4xf32> to vector<1x1x2x4xf32>
    tpu.vector_store %arg5[%c0_128, %c0_129, %c0_130, %c0_131], %154 {strides = array<i32>} : memref<1x1x2x4xf32, #tpu.memory_space<vmem>>, vector<1x1x2x4xf32>,
    return
  }
  func.func @transform_0(%arg0: i32, %arg1: i32) -> (i32, i32, i32, i32) {
    %c0_i32 = arith.constant 0 : i32
    %c0_i32_0 = arith.constant 0 : i32
    %c0_i32_1 = arith.constant 0 : i32
    %c0_i32_2 = arith.constant 0 : i32
    return %arg0, %c0_i32, %c0_i32_0, %c0_i32_1 : i32, i32, i32, i32
  }
  func.func @transform_1(%arg0: i32, %arg1: i32) -> (i32, i32) {
    %c0_i32 = arith.constant 0 : i32
    %c0_i32_0 = arith.constant 0 : i32
    %c0_i32_1 = arith.constant 0 : i32
    return %c0_i32, %c0_i32_0 : i32, i32
  }
  func.func @transform_2(%arg0: i32, %arg1: i32) -> (i32, i32, i32, i32) {
    %c0_i32 = arith.constant 0 : i32
    %c0_i32_0 = arith.constant 0 : i32
    %c0_i32_1 = arith.constant 0 : i32
    return %arg0, %arg1, %c0_i32, %c0_i32_0 : i32, i32, i32, i32
  }
  func.func @transform_3(%arg0: i32, %arg1: i32) -> (i32, i32, i32, i32) {
    %c0_i32 = arith.constant 0 : i32
    %c0_i32_0 = arith.constant 0 : i32
    %c0_i32_1 = arith.constant 0 : i32
    return %arg0, %arg1, %c0_i32, %c0_i32_0 : i32, i32, i32, i32
  }
}

module attributes {stable_mosaic.version = 11 : i64} {
  func.func @_conv3x3s2_kernel(%arg0: i32, %arg1: i32, %arg2: memref<1x5x5x16xbf16, #tpu.memory_space<vmem>>, %arg3: memref<64x8xbf16, #tpu.memory_space<vmem>>, %arg4: memref<1x1x16x8xbf16, #tpu.memory_space<vmem>>, %arg5: memref<1x1x2x8xf32, #tpu.memory_space<vmem>>, %arg6: memref<16x64xbf16, #tpu.memory_space<vmem>>) attributes {dimension_semantics = [#tpu.dimension_semantics<parallel>, #tpu.dimension_semantics<parallel>], iteration_bounds = array<i64: 2, 1>, scalar_prefetch = 0 : i64, scratch_operands = 1 : i64, tpu.core_type = #tpu.core_type<tc>, window_params = [{transform_indices = @transform_0, window_bounds = array<i64: 1, 5, 5, 16>}, {pipeline_mode = #tpu.pipeline_mode<synchronous>, transform_indices = @transform_1, window_bounds = array<i64: 64, 8>}, {transform_indices = @transform_2, window_bounds = array<i64: 1, 1, 16, 8>}, {transform_indices = @transform_3, window_bounds = array<i64: 1, 1, 2, 8>}]} {
    %c4_i32 = arith.constant 4 : i32
    %0 = arith.muli %arg1, %c4_i32 : i32
    %1 = tpu.assume_multiple %0, 4 : i32
    %c0_i32 = arith.constant 0 : i32
    %2 = arith.addi %1, %c0_i32 : i32
    %c0 = arith.constant 0 : index
    %3 = arith.index_cast %2 : i32 to index
    %c0_0 = arith.constant 0 : index
    %c0_1 = arith.constant 0 : index
    %4 = vector.load %arg2[%c0, %3, %c0_0, %c0_1] : memref<1x5x5x16xbf16, #tpu.memory_space<vmem>>, vector<1x1x5x16xbf16>
    %5 = vector.shape_cast %4 : vector<1x1x5x16xbf16> to vector<5x16xbf16>
    %c0_i32_2 = arith.constant 0 : i32
    %6 = arith.addi %1, %c0_i32_2 : i32
    %c1_i32 = arith.constant 1 : i32
    %7 = arith.addi %6, %c1_i32 : i32
    %c0_3 = arith.constant 0 : index
    %8 = arith.index_cast %7 : i32 to index
    %c0_4 = arith.constant 0 : index
    %c0_5 = arith.constant 0 : index
    %9 = vector.load %arg2[%c0_3, %8, %c0_4, %c0_5] : memref<1x5x5x16xbf16, #tpu.memory_space<vmem>>, vector<1x1x5x16xbf16>
    %10 = vector.shape_cast %9 : vector<1x1x5x16xbf16> to vector<5x16xbf16>
    %11 = vector.extract_strided_slice %5 {offsets = [0, 0], sizes = [4, 16], strides = [1, 1]} : vector<5x16xbf16> to vector<4x16xbf16>
    %12 = vector.extract_strided_slice %5 {offsets = [1, 0], sizes = [4, 16], strides = [1, 1]} : vector<5x16xbf16> to vector<4x16xbf16>
    %13 = vector.extract_strided_slice %10 {offsets = [0, 0], sizes = [4, 16], strides = [1, 1]} : vector<5x16xbf16> to vector<4x16xbf16>
    %14 = vector.extract_strided_slice %10 {offsets = [1, 0], sizes = [4, 16], strides = [1, 1]} : vector<5x16xbf16> to vector<4x16xbf16>
    %c0_6 = arith.constant 0 : index
    %c0_7 = arith.constant 0 : index
    %15 = vector.load %arg6[%c0_6, %c0_7] : memref<16x64xbf16, #tpu.memory_space<vmem>>, vector<4x16xbf16>
    tpu.vector_store %arg6[%c0_6, %c0_7], %11 {strides = array<i32>} : memref<16x64xbf16, #tpu.memory_space<vmem>>, vector<4x16xbf16>,
    %c0_8 = arith.constant 0 : index
    %c16 = arith.constant 16 : index
    %16 = vector.load %arg6[%c0_8, %c16] : memref<16x64xbf16, #tpu.memory_space<vmem>>, vector<4x16xbf16>
    tpu.vector_store %arg6[%c0_8, %c16], %12 {strides = array<i32>} : memref<16x64xbf16, #tpu.memory_space<vmem>>, vector<4x16xbf16>,
    %c0_9 = arith.constant 0 : index
    %c32 = arith.constant 32 : index
    %17 = vector.load %arg6[%c0_9, %c32] : memref<16x64xbf16, #tpu.memory_space<vmem>>, vector<4x16xbf16>
    tpu.vector_store %arg6[%c0_9, %c32], %13 {strides = array<i32>} : memref<16x64xbf16, #tpu.memory_space<vmem>>, vector<4x16xbf16>,
    %c0_10 = arith.constant 0 : index
    %c48 = arith.constant 48 : index
    %18 = vector.load %arg6[%c0_10, %c48] : memref<16x64xbf16, #tpu.memory_space<vmem>>, vector<4x16xbf16>
    tpu.vector_store %arg6[%c0_10, %c48], %14 {strides = array<i32>} : memref<16x64xbf16, #tpu.memory_space<vmem>>, vector<4x16xbf16>,
    %c1_i32_11 = arith.constant 1 : i32
    %19 = arith.addi %1, %c1_i32_11 : i32
    %c0_12 = arith.constant 0 : index
    %20 = arith.index_cast %19 : i32 to index
    %c0_13 = arith.constant 0 : index
    %c0_14 = arith.constant 0 : index
    %21 = vector.load %arg2[%c0_12, %20, %c0_13, %c0_14] : memref<1x5x5x16xbf16, #tpu.memory_space<vmem>>, vector<1x1x5x16xbf16>
    %22 = vector.shape_cast %21 : vector<1x1x5x16xbf16> to vector<5x16xbf16>
    %c1_i32_15 = arith.constant 1 : i32
    %23 = arith.addi %1, %c1_i32_15 : i32
    %c1_i32_16 = arith.constant 1 : i32
    %24 = arith.addi %23, %c1_i32_16 : i32
    %c0_17 = arith.constant 0 : index
    %25 = arith.index_cast %24 : i32 to index
    %c0_18 = arith.constant 0 : index
    %c0_19 = arith.constant 0 : index
    %26 = vector.load %arg2[%c0_17, %25, %c0_18, %c0_19] : memref<1x5x5x16xbf16, #tpu.memory_space<vmem>>, vector<1x1x5x16xbf16>
    %27 = vector.shape_cast %26 : vector<1x1x5x16xbf16> to vector<5x16xbf16>
    %28 = vector.extract_strided_slice %22 {offsets = [0, 0], sizes = [4, 16], strides = [1, 1]} : vector<5x16xbf16> to vector<4x16xbf16>
    %29 = vector.extract_strided_slice %22 {offsets = [1, 0], sizes = [4, 16], strides = [1, 1]} : vector<5x16xbf16> to vector<4x16xbf16>
    %30 = vector.extract_strided_slice %27 {offsets = [0, 0], sizes = [4, 16], strides = [1, 1]} : vector<5x16xbf16> to vector<4x16xbf16>
    %31 = vector.extract_strided_slice %27 {offsets = [1, 0], sizes = [4, 16], strides = [1, 1]} : vector<5x16xbf16> to vector<4x16xbf16>
    %c4 = arith.constant 4 : index
    %c0_20 = arith.constant 0 : index
    %32 = vector.load %arg6[%c4, %c0_20] : memref<16x64xbf16, #tpu.memory_space<vmem>>, vector<4x16xbf16>
    tpu.vector_store %arg6[%c4, %c0_20], %28 {strides = array<i32>} : memref<16x64xbf16, #tpu.memory_space<vmem>>, vector<4x16xbf16>,
    %c4_21 = arith.constant 4 : index
    %c16_22 = arith.constant 16 : index
    %33 = vector.load %arg6[%c4_21, %c16_22] : memref<16x64xbf16, #tpu.memory_space<vmem>>, vector<4x16xbf16>
    tpu.vector_store %arg6[%c4_21, %c16_22], %29 {strides = array<i32>} : memref<16x64xbf16, #tpu.memory_space<vmem>>, vector<4x16xbf16>,
    %c4_23 = arith.constant 4 : index
    %c32_24 = arith.constant 32 : index
    %34 = vector.load %arg6[%c4_23, %c32_24] : memref<16x64xbf16, #tpu.memory_space<vmem>>, vector<4x16xbf16>
    tpu.vector_store %arg6[%c4_23, %c32_24], %30 {strides = array<i32>} : memref<16x64xbf16, #tpu.memory_space<vmem>>, vector<4x16xbf16>,
    %c4_25 = arith.constant 4 : index
    %c48_26 = arith.constant 48 : index
    %35 = vector.load %arg6[%c4_25, %c48_26] : memref<16x64xbf16, #tpu.memory_space<vmem>>, vector<4x16xbf16>
    tpu.vector_store %arg6[%c4_25, %c48_26], %31 {strides = array<i32>} : memref<16x64xbf16, #tpu.memory_space<vmem>>, vector<4x16xbf16>,
    %c2_i32 = arith.constant 2 : i32
    %36 = arith.addi %1, %c2_i32 : i32
    %c0_27 = arith.constant 0 : index
    %37 = arith.index_cast %36 : i32 to index
    %c0_28 = arith.constant 0 : index
    %c0_29 = arith.constant 0 : index
    %38 = vector.load %arg2[%c0_27, %37, %c0_28, %c0_29] : memref<1x5x5x16xbf16, #tpu.memory_space<vmem>>, vector<1x1x5x16xbf16>
    %39 = vector.shape_cast %38 : vector<1x1x5x16xbf16> to vector<5x16xbf16>
    %c2_i32_30 = arith.constant 2 : i32
    %40 = arith.addi %1, %c2_i32_30 : i32
    %c1_i32_31 = arith.constant 1 : i32
    %41 = arith.addi %40, %c1_i32_31 : i32
    %c0_32 = arith.constant 0 : index
    %42 = arith.index_cast %41 : i32 to index
    %c0_33 = arith.constant 0 : index
    %c0_34 = arith.constant 0 : index
    %43 = vector.load %arg2[%c0_32, %42, %c0_33, %c0_34] : memref<1x5x5x16xbf16, #tpu.memory_space<vmem>>, vector<1x1x5x16xbf16>
    %44 = vector.shape_cast %43 : vector<1x1x5x16xbf16> to vector<5x16xbf16>
    %45 = vector.extract_strided_slice %39 {offsets = [0, 0], sizes = [4, 16], strides = [1, 1]} : vector<5x16xbf16> to vector<4x16xbf16>
    %46 = vector.extract_strided_slice %39 {offsets = [1, 0], sizes = [4, 16], strides = [1, 1]} : vector<5x16xbf16> to vector<4x16xbf16>
    %47 = vector.extract_strided_slice %44 {offsets = [0, 0], sizes = [4, 16], strides = [1, 1]} : vector<5x16xbf16> to vector<4x16xbf16>
    %48 = vector.extract_strided_slice %44 {offsets = [1, 0], sizes = [4, 16], strides = [1, 1]} : vector<5x16xbf16> to vector<4x16xbf16>
    %c8 = arith.constant 8 : index
    %c0_35 = arith.constant 0 : index
    %49 = vector.load %arg6[%c8, %c0_35] : memref<16x64xbf16, #tpu.memory_space<vmem>>, vector<4x16xbf16>
    tpu.vector_store %arg6[%c8, %c0_35], %45 {strides = array<i32>} : memref<16x64xbf16, #tpu.memory_space<vmem>>, vector<4x16xbf16>,
    %c8_36 = arith.constant 8 : index
    %c16_37 = arith.constant 16 : index
    %50 = vector.load %arg6[%c8_36, %c16_37] : memref<16x64xbf16, #tpu.memory_space<vmem>>, vector<4x16xbf16>
    tpu.vector_store %arg6[%c8_36, %c16_37], %46 {strides = array<i32>} : memref<16x64xbf16, #tpu.memory_space<vmem>>, vector<4x16xbf16>,
    %c8_38 = arith.constant 8 : index
    %c32_39 = arith.constant 32 : index
    %51 = vector.load %arg6[%c8_38, %c32_39] : memref<16x64xbf16, #tpu.memory_space<vmem>>, vector<4x16xbf16>
    tpu.vector_store %arg6[%c8_38, %c32_39], %47 {strides = array<i32>} : memref<16x64xbf16, #tpu.memory_space<vmem>>, vector<4x16xbf16>,
    %c8_40 = arith.constant 8 : index
    %c48_41 = arith.constant 48 : index
    %52 = vector.load %arg6[%c8_40, %c48_41] : memref<16x64xbf16, #tpu.memory_space<vmem>>, vector<4x16xbf16>
    tpu.vector_store %arg6[%c8_40, %c48_41], %48 {strides = array<i32>} : memref<16x64xbf16, #tpu.memory_space<vmem>>, vector<4x16xbf16>,
    %c3_i32 = arith.constant 3 : i32
    %53 = arith.addi %1, %c3_i32 : i32
    %c0_42 = arith.constant 0 : index
    %54 = arith.index_cast %53 : i32 to index
    %c0_43 = arith.constant 0 : index
    %c0_44 = arith.constant 0 : index
    %55 = vector.load %arg2[%c0_42, %54, %c0_43, %c0_44] : memref<1x5x5x16xbf16, #tpu.memory_space<vmem>>, vector<1x1x5x16xbf16>
    %56 = vector.shape_cast %55 : vector<1x1x5x16xbf16> to vector<5x16xbf16>
    %c3_i32_45 = arith.constant 3 : i32
    %57 = arith.addi %1, %c3_i32_45 : i32
    %c1_i32_46 = arith.constant 1 : i32
    %58 = arith.addi %57, %c1_i32_46 : i32
    %c0_47 = arith.constant 0 : index
    %59 = arith.index_cast %58 : i32 to index
    %c0_48 = arith.constant 0 : index
    %c0_49 = arith.constant 0 : index
    %60 = vector.load %arg2[%c0_47, %59, %c0_48, %c0_49] : memref<1x5x5x16xbf16, #tpu.memory_space<vmem>>, vector<1x1x5x16xbf16>
    %61 = vector.shape_cast %60 : vector<1x1x5x16xbf16> to vector<5x16xbf16>
    %62 = vector.extract_strided_slice %56 {offsets = [0, 0], sizes = [4, 16], strides = [1, 1]} : vector<5x16xbf16> to vector<4x16xbf16>
    %63 = vector.extract_strided_slice %56 {offsets = [1, 0], sizes = [4, 16], strides = [1, 1]} : vector<5x16xbf16> to vector<4x16xbf16>
    %64 = vector.extract_strided_slice %61 {offsets = [0, 0], sizes = [4, 16], strides = [1, 1]} : vector<5x16xbf16> to vector<4x16xbf16>
    %65 = vector.extract_strided_slice %61 {offsets = [1, 0], sizes = [4, 16], strides = [1, 1]} : vector<5x16xbf16> to vector<4x16xbf16>
    %c12 = arith.constant 12 : index
    %c0_50 = arith.constant 0 : index
    %66 = vector.load %arg6[%c12, %c0_50] : memref<16x64xbf16, #tpu.memory_space<vmem>>, vector<4x16xbf16>
    tpu.vector_store %arg6[%c12, %c0_50], %62 {strides = array<i32>} : memref<16x64xbf16, #tpu.memory_space<vmem>>, vector<4x16xbf16>,
    %c12_51 = arith.constant 12 : index
    %c16_52 = arith.constant 16 : index
    %67 = vector.load %arg6[%c12_51, %c16_52] : memref<16x64xbf16, #tpu.memory_space<vmem>>, vector<4x16xbf16>
    tpu.vector_store %arg6[%c12_51, %c16_52], %63 {strides = array<i32>} : memref<16x64xbf16, #tpu.memory_space<vmem>>, vector<4x16xbf16>,
    %c12_53 = arith.constant 12 : index
    %c32_54 = arith.constant 32 : index
    %68 = vector.load %arg6[%c12_53, %c32_54] : memref<16x64xbf16, #tpu.memory_space<vmem>>, vector<4x16xbf16>
    tpu.vector_store %arg6[%c12_53, %c32_54], %64 {strides = array<i32>} : memref<16x64xbf16, #tpu.memory_space<vmem>>, vector<4x16xbf16>,
    %c12_55 = arith.constant 12 : index
    %c48_56 = arith.constant 48 : index
    %69 = vector.load %arg6[%c12_55, %c48_56] : memref<16x64xbf16, #tpu.memory_space<vmem>>, vector<4x16xbf16>
    tpu.vector_store %arg6[%c12_55, %c48_56], %65 {strides = array<i32>} : memref<16x64xbf16, #tpu.memory_space<vmem>>, vector<4x16xbf16>,
    %c0_57 = arith.constant 0 : index
    %c0_58 = arith.constant 0 : index
    %70 = vector.load %arg6[%c0_57, %c0_58] : memref<16x64xbf16, #tpu.memory_space<vmem>>, vector<16x64xbf16>
    %c0_59 = arith.constant 0 : index
    %c0_60 = arith.constant 0 : index
    %71 = vector.load %arg3[%c0_59, %c0_60] : memref<64x8xbf16, #tpu.memory_space<vmem>>, vector<64x8xbf16>
    %cst = arith.constant dense<0.000000e+00> : vector<16x8xf32>
    %72 = tpu.matmul %70, %71, %cst {dimension_numbers = #tpu.dot_dimension_numbers<[1], [0], [0], [1], [0, 0, 1, 1], [], []>} : vector<16x64xbf16>, vector<64x8xbf16>, vector<16x8xf32> -> vector<16x8xf32>
    %73 = arith.truncf %72 : vector<16x8xf32> to vector<16x8xbf16>
    %c0_61 = arith.constant 0 : index
    %c0_62 = arith.constant 0 : index
    %c0_63 = arith.constant 0 : index
    %c0_64 = arith.constant 0 : index
    %74 = vector.load %arg4[%c0_61, %c0_62, %c0_63, %c0_64] : memref<1x1x16x8xbf16, #tpu.memory_space<vmem>>, vector<1x1x16x8xbf16>
    %75 = vector.shape_cast %74 : vector<1x1x16x8xbf16> to vector<16x8xbf16>
    %76 = vector.shape_cast %73 : vector<16x8xbf16> to vector<1x1x16x8xbf16>
    tpu.vector_store %arg4[%c0_61, %c0_62, %c0_63, %c0_64], %76 {strides = array<i32>} : memref<1x1x16x8xbf16, #tpu.memory_space<vmem>>, vector<1x1x16x8xbf16>,
    %77 = arith.extf %73 : vector<16x8xbf16> to vector<16x8xf32>
    %cst_65 = arith.constant dense<0.000000e+00> : vector<8xf32>
    %78 = vector.multi_reduction <add>, %77, %cst_65 [0] : vector<16x8xf32> to vector<8xf32>
    %79 = vector.shape_cast %78 : vector<8xf32> to vector<1x8xf32>
    %80 = arith.mulf %77, %77 : vector<16x8xf32>
    %cst_66 = arith.constant dense<0.000000e+00> : vector<8xf32>
    %81 = vector.multi_reduction <add>, %80, %cst_66 [0] : vector<16x8xf32> to vector<8xf32>
    %82 = vector.shape_cast %81 : vector<8xf32> to vector<1x8xf32>
    %83 = tpu.concatenate %79, %82 in 0 : vector<1x8xf32>, vector<1x8xf32> -> vector<2x8xf32>
    %c0_67 = arith.constant 0 : index
    %c0_68 = arith.constant 0 : index
    %c0_69 = arith.constant 0 : index
    %c0_70 = arith.constant 0 : index
    %84 = vector.load %arg5[%c0_67, %c0_68, %c0_69, %c0_70] : memref<1x1x2x8xf32, #tpu.memory_space<vmem>>, vector<1x1x2x8xf32>
    %85 = vector.shape_cast %84 : vector<1x1x2x8xf32> to vector<2x8xf32>
    %86 = vector.shape_cast %83 : vector<2x8xf32> to vector<1x1x2x8xf32>
    tpu.vector_store %arg5[%c0_67, %c0_68, %c0_69, %c0_70], %86 {strides = array<i32>} : memref<1x1x2x8xf32, #tpu.memory_space<vmem>>, vector<1x1x2x8xf32>,
    return
  }
  func.func @transform_0(%arg0: i32, %arg1: i32) -> (i32, i32, i32, i32) {
    %c0_i32 = arith.constant 0 : i32
    %c0_i32_0 = arith.constant 0 : i32
    %c0_i32_1 = arith.constant 0 : i32
    %c0_i32_2 = arith.constant 0 : i32
    return %arg0, %c0_i32, %c0_i32_0, %c0_i32_1 : i32, i32, i32, i32
  }
  func.func @transform_1(%arg0: i32, %arg1: i32) -> (i32, i32) {
    %c0_i32 = arith.constant 0 : i32
    %c0_i32_0 = arith.constant 0 : i32
    %c0_i32_1 = arith.constant 0 : i32
    return %c0_i32, %c0_i32_0 : i32, i32
  }
  func.func @transform_2(%arg0: i32, %arg1: i32) -> (i32, i32, i32, i32) {
    %c0_i32 = arith.constant 0 : i32
    %c0_i32_0 = arith.constant 0 : i32
    %c0_i32_1 = arith.constant 0 : i32
    return %arg0, %arg1, %c0_i32, %c0_i32_0 : i32, i32, i32, i32
  }
  func.func @transform_3(%arg0: i32, %arg1: i32) -> (i32, i32, i32, i32) {
    %c0_i32 = arith.constant 0 : i32
    %c0_i32_0 = arith.constant 0 : i32
    %c0_i32_1 = arith.constant 0 : i32
    return %arg0, %arg1, %c0_i32, %c0_i32_0 : i32, i32, i32, i32
  }
}

module attributes {stable_mosaic.version = 11 : i64} {
  func.func @_bn_relu_proj_kernel(%arg0: i32, %arg1: memref<32x8xbf16, #tpu.memory_space<vmem>>, %arg2: memref<1x8xf32, #tpu.memory_space<vmem>>, %arg3: memref<1x8xf32, #tpu.memory_space<vmem>>, %arg4: memref<8x32xbf16, #tpu.memory_space<vmem>>, %arg5: memref<1x32xf32, #tpu.memory_space<vmem>>, %arg6: memref<32x32xf32, #tpu.memory_space<vmem>>) attributes {dimension_semantics = [#tpu.dimension_semantics<parallel>], iteration_bounds = array<i64: 1>, scalar_prefetch = 0 : i64, scratch_operands = 0 : i64, tpu.core_type = #tpu.core_type<tc>, window_params = [{transform_indices = @transform_0, window_bounds = array<i64: 32, 8>}, {pipeline_mode = #tpu.pipeline_mode<synchronous>, transform_indices = @transform_1, window_bounds = array<i64: 1, 8>}, {pipeline_mode = #tpu.pipeline_mode<synchronous>, transform_indices = @transform_2, window_bounds = array<i64: 1, 8>}, {pipeline_mode = #tpu.pipeline_mode<synchronous>, transform_indices = @transform_3, window_bounds = array<i64: 8, 32>}, {pipeline_mode = #tpu.pipeline_mode<synchronous>, transform_indices = @transform_4, window_bounds = array<i64: 1, 32>}, {transform_indices = @transform_5, window_bounds = array<i64: 32, 32>}]} {
    %c0 = arith.constant 0 : index
    %c0_0 = arith.constant 0 : index
    %0 = vector.load %arg1[%c0, %c0_0] : memref<32x8xbf16, #tpu.memory_space<vmem>>, vector<32x8xbf16>
    %1 = arith.extf %0 : vector<32x8xbf16> to vector<32x8xf32>
    %c0_1 = arith.constant 0 : index
    %c0_2 = arith.constant 0 : index
    %2 = vector.load %arg2[%c0_1, %c0_2] : memref<1x8xf32, #tpu.memory_space<vmem>>, vector<1x8xf32>
    %3 = vector.broadcast %2 : vector<1x8xf32> to vector<32x8xf32>
    %4 = arith.mulf %1, %3 : vector<32x8xf32>
    %c0_3 = arith.constant 0 : index
    %c0_4 = arith.constant 0 : index
    %5 = vector.load %arg3[%c0_3, %c0_4] : memref<1x8xf32, #tpu.memory_space<vmem>>, vector<1x8xf32>
    %6 = vector.broadcast %5 : vector<1x8xf32> to vector<32x8xf32>
    %7 = arith.addf %4, %6 : vector<32x8xf32>
    %cst = arith.constant 0.000000e+00 : f32
    %8 = vector.broadcast %cst : f32 to vector<32x8xf32>
    %9 = arith.maximumf %7, %8 : vector<32x8xf32>
    %10 = arith.truncf %9 : vector<32x8xf32> to vector<32x8xbf16>
    %c0_5 = arith.constant 0 : index
    %c0_6 = arith.constant 0 : index
    %11 = vector.load %arg4[%c0_5, %c0_6] : memref<8x32xbf16, #tpu.memory_space<vmem>>, vector<8x32xbf16>
    %cst_7 = arith.constant dense<0.000000e+00> : vector<32x32xf32>
    %12 = tpu.matmul %10, %11, %cst_7 {dimension_numbers = #tpu.dot_dimension_numbers<[1], [0], [0], [1], [0, 0, 1, 1], [], []>} : vector<32x8xbf16>, vector<8x32xbf16>, vector<32x32xf32> -> vector<32x32xf32>
    %c0_8 = arith.constant 0 : index
    %c0_9 = arith.constant 0 : index
    %13 = vector.load %arg5[%c0_8, %c0_9] : memref<1x32xf32, #tpu.memory_space<vmem>>, vector<1x32xf32>
    %14 = vector.broadcast %13 : vector<1x32xf32> to vector<32x32xf32>
    %15 = arith.addf %12, %14 : vector<32x32xf32>
    %c0_10 = arith.constant 0 : index
    %c0_11 = arith.constant 0 : index
    %16 = vector.load %arg6[%c0_10, %c0_11] : memref<32x32xf32, #tpu.memory_space<vmem>>, vector<32x32xf32>
    tpu.vector_store %arg6[%c0_10, %c0_11], %15 {strides = array<i32>} : memref<32x32xf32, #tpu.memory_space<vmem>>, vector<32x32xf32>,
    return
  }
  func.func @transform_0(%arg0: i32) -> (i32, i32) {
    %c0_i32 = arith.constant 0 : i32
    %c0_i32_0 = arith.constant 0 : i32
    return %arg0, %c0_i32 : i32, i32
  }
  func.func @transform_1(%arg0: i32) -> (i32, i32) {
    %c0_i32 = arith.constant 0 : i32
    %c0_i32_0 = arith.constant 0 : i32
    %c0_i32_1 = arith.constant 0 : i32
    return %c0_i32, %c0_i32_0 : i32, i32
  }
  func.func @transform_2(%arg0: i32) -> (i32, i32) {
    %c0_i32 = arith.constant 0 : i32
    %c0_i32_0 = arith.constant 0 : i32
    %c0_i32_1 = arith.constant 0 : i32
    return %c0_i32, %c0_i32_0 : i32, i32
  }
  func.func @transform_3(%arg0: i32) -> (i32, i32) {
    %c0_i32 = arith.constant 0 : i32
    %c0_i32_0 = arith.constant 0 : i32
    %c0_i32_1 = arith.constant 0 : i32
    return %c0_i32, %c0_i32_0 : i32, i32
  }
  func.func @transform_4(%arg0: i32) -> (i32, i32) {
    %c0_i32 = arith.constant 0 : i32
    %c0_i32_0 = arith.constant 0 : i32
    %c0_i32_1 = arith.constant 0 : i32
    return %c0_i32, %c0_i32_0 : i32, i32
  }
  func.func @transform_5(%arg0: i32) -> (i32, i32) {
    %c0_i32 = arith.constant 0 : i32
    %c0_i32_0 = arith.constant 0 : i32
    return %arg0, %c0_i32 : i32, i32
  }
}

</mosaic_0001>

<llo_original>
// kernel: conv_stem_forward.3
$region0: #{conv_stem_forward.3}
  #allocation0 [shape = 'u32[]', space=smem, size = 0x4, offset = 0x4, fixed_abs, tag = 'smem constant byte address 0x4 - core index']
  #allocation1 [shape = 'u32[144,128]{1,0:T(1,128)}', space=vmem, size = 0x12000, scoped, tag = 'internal scratch']
  #allocation2 [shape = 'bf16[64,48]{1,0:T(16,128)(2,1)}', space=vmem, size = 0x4000, scoped, tag = 'scratch operand']
  %s0 = inlined_call_operand.hbm [shape: bf16[2,9,9,12], index: 0, kind: input, shape index: {}]
  %s1 = inlined_call_operand.hbm [shape: bf16[48,4], index: 1, kind: input, shape index: {}]
  %s2 = inlined_call_operand.hbm [shape: bf16[2,1,64,4], index: 2, kind: output, shape index: {0}]
  %s3 = inlined_call_operand.hbm [shape: f32[2,1,2,4], index: 3, kind: output, shape index: {1}]
  %4 = xla_tuple %s2, %s3
  %s5 = sld [smem:[#allocation0]]
  $region57: #{conv_stem_forward.3} parent=0
    _
  %s7 = ssub.s32 1, %s5
  %s8 = scalar_select 0, %s7, %s5
  $region1: #{conv_stem_forward.3} parent=0
    #allocation3 [shape = 'u8[73728]{0}', space=vmem, size = 0x12000, scoped, tag = 'input window, operand 0']
    #allocation4 [shape = 's32[2]{0}', space=sflag, size = 0x8, scoped, tag = 'scoped memory for conv_stem_forward.3']
    #allocation5 [shape = 's32[2]{0}', space=sflag, size = 0x8, scoped, tag = 'scoped memory for conv_stem_forward.3']
    #allocation6 [shape = 'u8[12288]{0}', space=vmem, size = 0x3000, scoped, tag = 'input window, operand 1, single buffered']
    #allocation7 [shape = 's32[1]{0}', space=sflag, size = 0x4, scoped, tag = 'scoped memory for conv_stem_forward.3']
    #allocation8 [shape = 'u8[32768]{0}', space=vmem, size = 0x8000, scoped, tag = 'output window, operand 0']
    #allocation9 [shape = 'u8[2048]{0}', space=vmem, size = 0x800, scoped, tag = 'output window, operand 1']
    #allocation10 [shape = 's32[2]{0}', space=sflag, size = 0x8, scoped, tag = 'scoped memory for conv_stem_forward.3']
    %9 = vsyncpa [#allocation4], 0
    %s10 = scalar_lea.sflag [#allocation4], 1
    %11 = vsyncpa %s10, 0
    %12 = vsyncpa [#allocation7], 0
    %13 = vsyncpa [#allocation5], 0
    %s14 = scalar_lea.sflag [#allocation5], 1
    %15 = vsyncpa %s14, 0
    %16 = vsyncpa [#allocation10], 0
    %s17 = scalar_lea.sflag [#allocation10], 1
    %18 = vsyncpa %s17, 0
    loop: start=0, step=1, limit=4
    $region2: #{conv_stem_forward.3} parent=1 // loop_pre_header
      _
    $region3: #{conv_stem_forward.3} parent=1 // loop_header
      %s20 = sphi 0, %s24
      %p21 = scmp.ge.s32.totalorder %s20, 4
      %s27 = sphi 0, %s39
      %s28 = sphi 0, %s35
      %s29 = sphi 0, %s27
      %s30 = sphi 0, %s28
      %s31 = sphi 0, %s29
      %s32 = sphi 0, %s30
      %s42 = sphi 0, %s44
      %s45 = sphi 0, %s42
      %s46 = sphi 0, %s45
      %s62 = sphi 0, %s46
      %s66 = sphi 0, %s66
      %s68 = sphi 0, %s66
      %s69 = sphi 0, %s68
      %s83 = sphi 0, %s69
      %s91 = sphi 0, %s93
      %s94 = sphi 0, %s91
      %s95 = sphi 0, %s94
      %s111 = sphi 0, %s95
      %s119 = sphi 0, %s121
      %s122 = sphi 0, %s119
      %s123 = sphi 0, %s122
      %s139 = sphi 0, %s123
    $region4: #{conv_stem_forward.3} parent=1 // loop_header_branch
      %23 = sbr.rel (%p21) target = $region8
    $region5: #{conv_stem_forward.3} parent=1 // loop_body
      %s25 = ssub.s32 %s20, 1
      %s26 = ssub.s32 %s20, 2
      %s33 = sadd.s32 1, %s28
      %p34 = scmp.ge.s32.totalorder %s33, 1
      %s35 = scalar_select %p34, 0, %s33
      %s36 = sadd.s32 1, %s27
      %s37 = scalar_select %p34, %s36, %s27
      %p38 = scmp.ge.s32.totalorder %s37, 2
      %s39 = scalar_select %p38, 0, %s37
      %s40 = ssub.s32 %s27, %s39
      %p41 = scmp.eq.s32.totalorder %s40, 0
      %s43 = sadd.s32 %s42, 1
      %s44 = scalar_select %p41, %s42, %s43
      %p47 = pneg %p41
      %p48 = scmp.eq.s32.totalorder %s20, 1
      %p49 = por %p47, %p48
      %p50 = scmp.ne.s32.totalorder %s42, %s45
      %p51 = scmp.eq.s32.totalorder %s20, 0
      %p52 = por %p50, %p51
      %p53 = scmp.ne.s32.totalorder %s42, %s45
      %p54 = scmp.eq.s32.totalorder %s25, 1
      %p55 = por %p53, %p54
      %p56 = scmp.ne.s32.totalorder %s45, %s46
      %p57 = scmp.eq.s32.totalorder %s25, 0
      %p58 = por %p56, %p57
      %p59 = scmp.ne.s32.totalorder %s45, %s46
      %p60 = scmp.eq.s32.totalorder %s26, 1
      %p61 = por %p59, %p60
      %p63 = scmp.ne.s32.totalorder %s46, %s62
      %p64 = scmp.eq.s32.totalorder %s26, 0
      %p65 = por %p63, %p64
      %s67 = sadd.s32 %s66, 1
      %p70 = scmp.eq.s32.totalorder %s20, 1
      %p71 = scmp.ne.s32.totalorder %s66, %s68
      %p72 = scmp.eq.s32.totalorder %s20, 0
      %p73 = por %p71, %p72
      %p74 = scmp.ne.s32.totalorder %s66, %s68
      %p75 = scmp.eq.s32.totalorder %s25, 1
      %p76 = por %p74, %p75
      %p77 = scmp.ne.s32.totalorder %s68, %s69
      %p78 = scmp.eq.s32.totalorder %s25, 0
      %p79 = por %p77, %p78
      %p80 = scmp.ne.s32.totalorder %s68, %s69
      %p81 = scmp.eq.s32.totalorder %s26, 1
      %p82 = por %p80, %p81
      %p84 = scmp.ne.s32.totalorder %s69, %s83
      %p85 = scmp.eq.s32.totalorder %s26, 0
      %p86 = por %p84, %p85
      %s87 = ssub.s32 %s27, %s39
      %s88 = ssub.s32 %s28, %s35
      %s89 = sor.u32 %s87, %s88
      %p90 = scmp.eq.s32.totalorder %s89, 0
      %s92 = sadd.s32 %s91, 1
      %s93 = scalar_select %p90, %s91, %s92
      %p96 = pneg %p90
      %p97 = scmp.eq.s32.totalorder %s20, 1
      %p98 = por %p96, %p97
      %p99 = scmp.ne.s32.totalorder %s91, %s94
      %p100 = scmp.eq.s32.totalorder %s20, 0
      %p101 = por %p99, %p100
      %p102 = scmp.ne.s32.totalorder %s91, %s94
      %p103 = scmp.eq.s32.totalorder %s25, 1
      %p104 = por %p102, %p103
      %p105 = scmp.ne.s32.totalorder %s94, %s95
      %p106 = scmp.eq.s32.totalorder %s25, 0
      %p107 = por %p105, %p106
      %p108 = scmp.ne.s32.totalorder %s94, %s95
      %p109 = scmp.eq.s32.totalorder %s26, 1
      %p110 = por %p108, %p109
      %p112 = scmp.ne.s32.totalorder %s95, %s111
      %p113 = scmp.eq.s32.totalorder %s26, 0
      %p114 = por %p112, %p113
      %s115 = ssub.s32 %s27, %s39
      %s116 = ssub.s32 %s28, %s35
      %s117 = sor.u32 %s115, %s116
      %p118 = scmp.eq.s32.totalorder %s117, 0
      %s120 = sadd.s32 %s119, 1
      %s121 = scalar_select %p118, %s119, %s120
      %p124 = pneg %p118
      %p125 = scmp.eq.s32.totalorder %s20, 1
      %p126 = por %p124, %p125
      %p127 = scmp.ne.s32.totalorder %s119, %s122
      %p128 = scmp.eq.s32.totalorder %s20, 0
      %p129 = por %p127, %p128
      %p130 = scmp.ne.s32.totalorder %s119, %s122
      %p131 = scmp.eq.s32.totalorder %s25, 1
      %p132 = por %p130, %p131
      %p133 = scmp.ne.s32.totalorder %s122, %s123
      %p134 = scmp.eq.s32.totalorder %s25, 0
      %p135 = por %p133, %p134
      %p136 = scmp.ne.s32.totalorder %s122, %s123
      %p137 = scmp.eq.s32.totalorder %s26, 1
      %p138 = por %p136, %p137
      %p140 = scmp.ne.s32.totalorder %s123, %s139
      %p141 = scmp.eq.s32.totalorder %s26, 0
      %p142 = por %p140, %p141
      %p143 = scmp.le.s32.totalorder 1, %s20
      %p144 = scmp.lt.s32.totalorder %s20, 3
      %p145 = pnand %p143, %p144
      %p146 = pneg %p145
      // Predicated region
      $region9: #{conv_stem_forward.3} parent=5 // pred_check
        _
      $region10: #{conv_stem_forward.3} parent=5 // pred_check_branch
        %148 = sbr.rel (%p145) target = $region12
      $region11: #{conv_stem_forward.3} parent=5 // pred_region
        %s149 = ssub.s32 %s20, 1
        // Predicated region
        $region13: #{conv_stem_forward.3} parent=11 // pred_check
          %p150 = pneg %p79
        $region14: #{conv_stem_forward.3} parent=11 // pred_check_branch
          %152 = sbr.rel (%p150) target = $region16
        $region15: #{conv_stem_forward.3} parent=11 // pred_region
          %s154 = ssub.s32 384, 384
          %155 = vsyncadd [#allocation7], %s154
          %s156 = sshll.u32 [#allocation6], 4
          %s157 = int_to_ptr.vmem [resolvable:$true] %s156
          %162 = dma.hbm_to_vmem [thread:$0]  %s1, 384, %s157, [#allocation7], 64, 64, 4
        $region16: #{conv_stem_forward.3} parent=11 // pred_fallthru
          _
      $region12: #{conv_stem_forward.3} parent=5 // pred_fallthru
        _
      %p163 = scmp.lt.s32.totalorder %s20, 2
      // Predicated region
      $region17: #{conv_stem_forward.3} parent=5 // pred_check
        %p164 = pneg %p163
      $region18: #{conv_stem_forward.3} parent=5 // pred_check_branch
        %166 = sbr.rel (%p164) target = $region20
      $region19: #{conv_stem_forward.3} parent=5 // pred_region
        // Predicated region
        $region21: #{conv_stem_forward.3} parent=19 // pred_check
          %p167 = pneg %p52
        $region22: #{conv_stem_forward.3} parent=19 // pred_check_branch
          %169 = sbr.rel (%p167) target = $region24
        $region23: #{conv_stem_forward.3} parent=19 // pred_region
          %s170 = sand.u32 %s42, 1
          %s171 = scalar_lea.sflag [#allocation4], %s170
          %s172 = sand.u32 %s42, 1
          %s173 = smul.addr %s172, 72
          %s174 = scalar_lea.vmem [#allocation3], %s173
          %s176 = ssub.s32 1152, 1152
          %177 = vsyncadd %s171, %s176
          %s178 = smul.addr %s27, 18
          %s179 = smul.addr %s178, 64
          %s180 = scalar_lea.hbm %s0, %s179
          %s181 = sshll.u32 %s174, 4
          %s182 = int_to_ptr.vmem [resolvable:$true] %s181
          %187 = dma.hbm_to_vmem [thread:$0]  %s180, 1152, %s182, %s171, 64, 64, 4
        $region24: #{conv_stem_forward.3} parent=19 // pred_fallthru
          _
      $region20: #{conv_stem_forward.3} parent=5 // pred_fallthru
        _
      %p188 = scmp.le.s32.totalorder 1, %s20
      %p189 = scmp.lt.s32.totalorder %s20, 3
      %p190 = pnand %p188, %p189
      %p191 = pneg %p190
      // Predicated region
      $region25: #{conv_stem_forward.3} parent=5 // pred_check
        _
      $region26: #{conv_stem_forward.3} parent=5 // pred_check_branch
        %193 = sbr.rel (%p190) target = $region28
      $region27: #{conv_stem_forward.3} parent=5 // pred_region
        %s194 = ssub.s32 %s20, 1
        %s195 = sand.u32 %s45, 1
        %s196 = scalar_lea.sflag [#allocation4], %s195
        %s197 = sand.u32 %s45, 1
        %s198 = smul.addr %s197, 72
        %s199 = scalar_lea.vmem [#allocation3], %s198
        // Predicated region
        $region29: #{conv_stem_forward.3} parent=27 // pred_check
          %p200 = pneg %p58
        $region30: #{conv_stem_forward.3} parent=27 // pred_check_branch
          %202 = sbr.rel (%p200) target = $region32
        $region31: #{conv_stem_forward.3} parent=27 // pred_region
          %203 = dma.done %s196, 1152
        $region32: #{conv_stem_forward.3} parent=27 // pred_fallthru
          _
        // Predicated region
        $region33: #{conv_stem_forward.3} parent=27 // pred_check
          %p204 = pneg %p79
        $region34: #{conv_stem_forward.3} parent=27 // pred_check_branch
          %206 = sbr.rel (%p204) target = $region36
        $region35: #{conv_stem_forward.3} parent=27 // pred_region
          %207 = dma.done [#allocation7], 384
        $region36: #{conv_stem_forward.3} parent=27 // pred_fallthru
          _
        %s208 = sand.u32 %s45, 1
        %s209 = scalar_lea.sflag [#allocation4], %s208
        %s210 = sand.u32 %s45, 1
        %s211 = smul.addr %s210, 72
        %s212 = scalar_lea.vmem [#allocation3], %s211
        %p213 = pneg %p58
        %p214 = pneg %p55
        %p215 = pneg %p79
        %p216 = pneg %p76
        %p217 = pneg %p107
        %p218 = pneg %p104
        %s219 = sand.u32 %s94, 1
        %s220 = scalar_lea.sflag [#allocation5], %s219
        %s221 = sand.u32 %s94, 1
        %s222 = smul.addr %s221, 32
        %s223 = scalar_lea.vmem [#allocation8], %s222
        %p224 = pneg %p135
        %p225 = pneg %p132
        %s226 = sand.u32 %s122, 1
        %s227 = scalar_lea.sflag [#allocation10], %s226
        %s228 = sand.u32 %s122, 1
        %s229 = smul.addr %s228, 2
        %s230 = scalar_lea.vmem [#allocation9], %s229
        %s232 = smul.u32 %s30, 8
        %s233 = smul.u32 %s232, 2
        %s234 = smul.addr %s233, 4
        %s235 = scalar_lea.vmem %s199, %s234 [#allocation3]
        %v236 = vld [vmem:[%s235] sm:$0xf]
        %v237 = vld [vmem:[%s235 + $0x4] sm:$0x1]
        %s238 = sadd.s32 %s232, 1
        %s239 = smul.u32 %s238, 2
        %s240 = smul.addr %s239, 4
        %s241 = scalar_lea.vmem %s199, %s240 [#allocation3]
        %v242 = vld [vmem:[%s241] sm:$0xf]
        %v243 = vld [vmem:[%s241 + $0x4] sm:$0x1]
        %vm244 = vcmask 93184
        %245 = vst.msk [vmem:[#allocation2] sm:$0xf] %vm244, %v236
        %v248 = vunpack.c.l.b16 %v236
        %v249 = vunpack.c.l.b16 %v237
        %v250 = vpack.c.b16 %v249, %v248
        %v252 = vshrl.u32 %v250, 16
        %v254 = vshll.u32 %v250, 16
        %v256 = vrot.slane %v254, 1
        %v257 = vor.u32 %v252, %v256
        %258 = vrot.lane.b32.xlu0 %v257, 12
        %v259 = vpop.permute.xlu0 %258
        %vm261 = vcmask 191584
        %262 = vst.msk [vmem:[#allocation2] sm:$0xf] %vm261, %v259
        %v264 = vunpack.c.l.b16 %v242
        %v265 = vpack.c.b16 %v264, %v264
        %266 = vrot.lane.b32.xlu0 %v265, 24
        %v267 = vpop.permute.xlu0 %266
        %vm269 = vcmask 289984
        %270 = vst.msk [vmem:[#allocation2] sm:$0xf] %vm269, %v267
        %v272 = vunpack.c.l.b16 %v243
        %v273 = vpack.c.b16 %v272, %v264
        %v275 = vshrl.u32 %v273, 16
        %v277 = vshll.u32 %v273, 16
        %v279 = vrot.slane %v277, 1
        %v280 = vor.u32 %v275, %v279
        %281 = vrot.lane.b32.xlu0 %v280, 36
        %v282 = vpop.permute.xlu0 %281
        %vm284 = vcmask 388384
        %285 = vst.msk [vmem:[#allocation2] sm:$0xf] %vm284, %v282
        %v286 = vld [vmem:[%s241] sm:$0xf]
        %v287 = vld [vmem:[%s241 + $0x4] sm:$0x1]
        %s288 = sadd.s32 %s232, 2
        %s289 = smul.u32 %s288, 2
        %s290 = smul.addr %s289, 4
        %s291 = scalar_lea.vmem %s199, %s290 [#allocation3]
        %v292 = vld [vmem:[%s291] sm:$0xf]
        %v293 = vld [vmem:[%s291 + $0x4] sm:$0x1]
        %v295 = vunpack.c.l.b16 %v286
        %v296 = vpack.c.b16 %v295, %v295
        %vm298 = vcmask 97284
        %299 = vst.msk [vmem:[#allocation2] sm:$0xf0] %vm298, %v296
        %v301 = vunpack.c.l.b16 %v287
        %v302 = vpack.c.b16 %v301, %v295
        %v304 = vshrl.u32 %v302, 16
        %v306 = vrot.slane %v304, 4
        %v307 = vshll.u32 %v302, 16
        %v309 = vrot.slane %v307, 5
        %v310 = vor.u32 %v306, %v309
        %311 = vrot.lane.b32.xlu0 %v310, 12
        %v312 = vpop.permute.xlu0 %311
        %vm314 = vcmask 195684
        %315 = vst.msk [vmem:[#allocation2] sm:$0xf0] %vm314, %v312
        %v317 = vunpack.c.l.b16 %v292
        %v318 = vpack.c.b16 %v317, %v317
        %319 = vrot.lane.b32.xlu0 %v318, 24
        %v320 = vpop.permute.xlu0 %319
        %vm322 = vcmask 294084
        %323 = vst.msk [vmem:[#allocation2] sm:$0xf0] %vm322, %v320
        %v325 = vunpack.c.l.b16 %v293
        %v326 = vpack.c.b16 %v325, %v317
        %v328 = vshrl.u32 %v326, 16
        %v330 = vrot.slane %v328, 4
        %v331 = vshll.u32 %v326, 16
        %v333 = vrot.slane %v331, 5
        %v334 = vor.u32 %v330, %v333
        %335 = vrot.lane.b32.xlu0 %v334, 36
        %v336 = vpop.permute.xlu0 %335
        %vm338 = vcmask 392484
        %339 = vst.msk [vmem:[#allocation2] sm:$0xf0] %vm338, %v336
        %v340 = vld [vmem:[%s291] sm:$0xf]
        %v341 = vld [vmem:[%s291 + $0x4] sm:$0x1]
        %s342 = sadd.s32 %s232, 3
        %s343 = smul.u32 %s342, 2
        %s344 = smul.addr %s343, 4
        %s345 = scalar_lea.vmem %s199, %s344 [#allocation3]
        %v346 = vld [vmem:[%s345] sm:$0xf]
        %v347 = vld [vmem:[%s345 + $0x4] sm:$0x1]
        %348 = vst.msk [vmem:[#allocation2 + $0x8] sm:$0xf] %vm244, %v340
        %v351 = vunpack.c.l.b16 %v340
        %v352 = vunpack.c.l.b16 %v341
        %v353 = vpack.c.b16 %v352, %v351
        %v355 = vshrl.u32 %v353, 16
        %v357 = vshll.u32 %v353, 16
        %v359 = vrot.slane %v357, 1
        %v360 = vor.u32 %v355, %v359
        %361 = vrot.lane.b32.xlu0 %v360, 12
        %v362 = vpop.permute.xlu0 %361
        %364 = vst.msk [vmem:[#allocation2 + $0x8] sm:$0xf] %vm261, %v362
        %v366 = vunpack.c.l.b16 %v346
        %v367 = vpack.c.b16 %v366, %v366
        %368 = vrot.lane.b32.xlu0 %v367, 24
        %v369 = vpop.permute.xlu0 %368
        %371 = vst.msk [vmem:[#allocation2 + $0x8] sm:$0xf] %vm269, %v369
        %v373 = vunpack.c.l.b16 %v347
        %v374 = vpack.c.b16 %v373, %v366
        %v376 = vshrl.u32 %v374, 16
        %v378 = vshll.u32 %v374, 16
        %v380 = vrot.slane %v378, 1
        %v381 = vor.u32 %v376, %v380
        %382 = vrot.lane.b32.xlu0 %v381, 36
        %v383 = vpop.permute.xlu0 %382
        %385 = vst.msk [vmem:[#allocation2 + $0x8] sm:$0xf] %vm284, %v383
        %v386 = vld [vmem:[%s345] sm:$0xf]
        %v387 = vld [vmem:[%s345 + $0x4] sm:$0x1]
        %s388 = sadd.s32 %s232, 4
        %s389 = smul.u32 %s388, 2
        %s390 = smul.addr %s389, 4
        %s391 = scalar_lea.vmem %s199, %s390 [#allocation3]
        %v392 = vld [vmem:[%s391] sm:$0xf]
        %v393 = vld [vmem:[%s391 + $0x4] sm:$0x1]
        %v395 = vunpack.c.l.b16 %v386
        %v396 = vpack.c.b16 %v395, %v395
        %398 = vst.msk [vmem:[#allocation2 + $0x8] sm:$0xf0] %vm298, %v396
        %v400 = vunpack.c.l.b16 %v387
        %v401 = vpack.c.b16 %v400, %v395
        %v403 = vshrl.u32 %v401, 16
        %v405 = vrot.slane %v403, 4
        %v406 = vshll.u32 %v401, 16
        %v408 = vrot.slane %v406, 5
        %v409 = vor.u32 %v405, %v408
        %410 = vrot.lane.b32.xlu0 %v409, 12
        %v411 = vpop.permute.xlu0 %410
        %413 = vst.msk [vmem:[#allocation2 + $0x8] sm:$0xf0] %vm314, %v411
        %v415 = vunpack.c.l.b16 %v392
        %v416 = vpack.c.b16 %v415, %v415
        %417 = vrot.lane.b32.xlu0 %v416, 24
        %v418 = vpop.permute.xlu0 %417
        %420 = vst.msk [vmem:[#allocation2 + $0x8] sm:$0xf0] %vm322, %v418
        %v422 = vunpack.c.l.b16 %v393
        %v423 = vpack.c.b16 %v422, %v415
        %v425 = vshrl.u32 %v423, 16
        %v427 = vrot.slane %v425, 4
        %v428 = vshll.u32 %v423, 16
        %v430 = vrot.slane %v428, 5
        %v431 = vor.u32 %v427, %v430
        %432 = vrot.lane.b32.xlu0 %v431, 36
        %v433 = vpop.permute.xlu0 %432
        %435 = vst.msk [vmem:[#allocation2 + $0x8] sm:$0xf0] %vm338, %v433
        %v436 = vld [vmem:[%s391] sm:$0xf]
        %v437 = vld [vmem:[%s391 + $0x4] sm:$0x1]
        %s438 = sadd.s32 %s232, 5
        %s439 = smul.u32 %s438, 2
        %s440 = smul.addr %s439, 4
        %s441 = scalar_lea.vmem %s199, %s440 [#allocation3]
        %v442 = vld [vmem:[%s441] sm:$0xf]
        %v443 = vld [vmem:[%s441 + $0x4] sm:$0x1]
        %444 = vst.msk [vmem:[#allocation2 + $0x10] sm:$0xf] %vm244, %v436
        %v447 = vunpack.c.l.b16 %v436
        %v448 = vunpack.c.l.b16 %v437
        %v449 = vpack.c.b16 %v448, %v447
        %v451 = vshrl.u32 %v449, 16
        %v453 = vshll.u32 %v449, 16
        %v455 = vrot.slane %v453, 1
        %v456 = vor.u32 %v451, %v455
        %457 = vrot.lane.b32.xlu0 %v456, 12
        %v458 = vpop.permute.xlu0 %457
        %460 = vst.msk [vmem:[#allocation2 + $0x10] sm:$0xf] %vm261, %v458
        %v462 = vunpack.c.l.b16 %v442
        %v463 = vpack.c.b16 %v462, %v462
        %464 = vrot.lane.b32.xlu0 %v463, 24
        %v465 = vpop.permute.xlu0 %464
        %467 = vst.msk [vmem:[#allocation2 + $0x10] sm:$0xf] %vm269, %v465
        %v469 = vunpack.c.l.b16 %v443
        %v470 = vpack.c.b16 %v469, %v462
        %v472 = vshrl.u32 %v470, 16
        %v474 = vshll.u32 %v470, 16
        %v476 = vrot.slane %v474, 1
        %v477 = vor.u32 %v472, %v476
        %478 = vrot.lane.b32.xlu0 %v477, 36
        %v479 = vpop.permute.xlu0 %478
        %481 = vst.msk [vmem:[#allocation2 + $0x10] sm:$0xf] %vm284, %v479
        %v482 = vld [vmem:[%s441] sm:$0xf]
        %v483 = vld [vmem:[%s441 + $0x4] sm:$0x1]
        %s484 = sadd.s32 %s232, 6
        %s485 = smul.u32 %s484, 2
        %s486 = smul.addr %s485, 4
        %s487 = scalar_lea.vmem %s199, %s486 [#allocation3]
        %v488 = vld [vmem:[%s487] sm:$0xf]
        %v489 = vld [vmem:[%s487 + $0x4] sm:$0x1]
        %v491 = vunpack.c.l.b16 %v482
        %v492 = vpack.c.b16 %v491, %v491
        %494 = vst.msk [vmem:[#allocation2 + $0x10] sm:$0xf0] %vm298, %v492
        %v496 = vunpack.c.l.b16 %v483
        %v497 = vpack.c.b16 %v496, %v491
        %v499 = vshrl.u32 %v497, 16
        %v501 = vrot.slane %v499, 4
        %v502 = vshll.u32 %v497, 16
        %v504 = vrot.slane %v502, 5
        %v505 = vor.u32 %v501, %v504
        %506 = vrot.lane.b32.xlu0 %v505, 12
        %v507 = vpop.permute.xlu0 %506
        %509 = vst.msk [vmem:[#allocation2 + $0x10] sm:$0xf0] %vm314, %v507
        %v511 = vunpack.c.l.b16 %v488
        %v512 = vpack.c.b16 %v511, %v511
        %513 = vrot.lane.b32.xlu0 %v512, 24
        %v514 = vpop.permute.xlu0 %513
        %516 = vst.msk [vmem:[#allocation2 + $0x10] sm:$0xf0] %vm322, %v514
        %v518 = vunpack.c.l.b16 %v489
        %v519 = vpack.c.b16 %v518, %v511
        %v521 = vshrl.u32 %v519, 16
        %v523 = vrot.slane %v521, 4
        %v524 = vshll.u32 %v519, 16
        %v526 = vrot.slane %v524, 5
        %v527 = vor.u32 %v523, %v526
        %528 = vrot.lane.b32.xlu0 %v527, 36
        %v529 = vpop.permute.xlu0 %528
        %531 = vst.msk [vmem:[#allocation2 + $0x10] sm:$0xf0] %vm338, %v529
        %v532 = vld [vmem:[%s487] sm:$0xf]
        %v533 = vld [vmem:[%s487 + $0x4] sm:$0x1]
        %s534 = sadd.s32 %s232, 7
        %s535 = smul.u32 %s534, 2
        %s536 = smul.addr %s535, 4
        %s537 = scalar_lea.vmem %s199, %s536 [#allocation3]
        %v538 = vld [vmem:[%s537] sm:$0xf]
        %v539 = vld [vmem:[%s537 + $0x4] sm:$0x1]
        %540 = vst.msk [vmem:[#allocation2 + $0x18] sm:$0xf] %vm244, %v532
        %v543 = vunpack.c.l.b16 %v532
        %v544 = vunpack.c.l.b16 %v533
        %v545 = vpack.c.b16 %v544, %v543
        %v547 = vshrl.u32 %v545, 16
        %v549 = vshll.u32 %v545, 16
        %v551 = vrot.slane %v549, 1
        %v552 = vor.u32 %v547, %v551
        %553 = vrot.lane.b32.xlu0 %v552, 12
        %v554 = vpop.permute.xlu0 %553
        %556 = vst.msk [vmem:[#allocation2 + $0x18] sm:$0xf] %vm261, %v554
        %v558 = vunpack.c.l.b16 %v538
        %v559 = vpack.c.b16 %v558, %v558
        %560 = vrot.lane.b32.xlu0 %v559, 24
        %v561 = vpop.permute.xlu0 %560
        %563 = vst.msk [vmem:[#allocation2 + $0x18] sm:$0xf] %vm269, %v561
        %v565 = vunpack.c.l.b16 %v539
        %v566 = vpack.c.b16 %v565, %v558
        %v568 = vshrl.u32 %v566, 16
        %v570 = vshll.u32 %v566, 16
        %v572 = vrot.slane %v570, 1
        %v573 = vor.u32 %v568, %v572
        %574 = vrot.lane.b32.xlu0 %v573, 36
        %v575 = vpop.permute.xlu0 %574
        %577 = vst.msk [vmem:[#allocation2 + $0x18] sm:$0xf] %vm284, %v575
        %v578 = vld [vmem:[%s537] sm:$0xf]
        %v579 = vld [vmem:[%s537 + $0x4] sm:$0x1]
        %s580 = sadd.s32 %s232, 8
        %s581 = smul.u32 %s580, 2
        %s582 = smul.addr %s581, 4
        %s583 = scalar_lea.vmem %s199, %s582 [#allocation3]
        %v584 = vld [vmem:[%s583] sm:$0xf]
        %v585 = vld [vmem:[%s583 + $0x4] sm:$0x1]
        %v587 = vunpack.c.l.b16 %v578
        %v588 = vpack.c.b16 %v587, %v587
        %590 = vst.msk [vmem:[#allocation2 + $0x18] sm:$0xf0] %vm298, %v588
        %v592 = vunpack.c.l.b16 %v579
        %v593 = vpack.c.b16 %v592, %v587
        %v595 = vshrl.u32 %v593, 16
        %v597 = vrot.slane %v595, 4
        %v598 = vshll.u32 %v593, 16
        %v600 = vrot.slane %v598, 5
        %v601 = vor.u32 %v597, %v600
        %602 = vrot.lane.b32.xlu0 %v601, 12
        %v603 = vpop.permute.xlu0 %602
        %605 = vst.msk [vmem:[#allocation2 + $0x18] sm:$0xf0] %vm314, %v603
        %v607 = vunpack.c.l.b16 %v584
        %v608 = vpack.c.b16 %v607, %v607
        %609 = vrot.lane.b32.xlu0 %v608, 24
        %v610 = vpop.permute.xlu0 %609
        %612 = vst.msk [vmem:[#allocation2 + $0x18] sm:$0xf0] %vm322, %v610
        %v614 = vunpack.c.l.b16 %v585
        %v615 = vpack.c.b16 %v614, %v607
        %v617 = vshrl.u32 %v615, 16
        %v619 = vrot.slane %v617, 4
        %v620 = vshll.u32 %v615, 16
        %v622 = vrot.slane %v620, 5
        %v623 = vor.u32 %v619, %v622
        %624 = vrot.lane.b32.xlu0 %v623, 36
        %v625 = vpop.permute.xlu0 %624
        %627 = vst.msk [vmem:[#allocation2 + $0x18] sm:$0xf0] %vm338, %v625
        %v628 = vld [vmem:[#allocation2] sm:$0xff]
        %v629 = vld [vmem:[#allocation2 + $0x8] sm:$0xff]
        %v630 = vld [vmem:[#allocation2 + $0x10] sm:$0xff]
        %v631 = vld [vmem:[#allocation2 + $0x18] sm:$0xff]
        %v632 = vld [vmem:[#allocation6] sm:$0xf]
        %v633 = vld [vmem:[#allocation6 + $0x4] sm:$0xf]
        %v634 = vld [vmem:[#allocation6 + $0x8] sm:$0xf]
        %v635 = vld [vmem:[#allocation6 + $0xc] sm:$0xf]
        %v636 = vld [vmem:[#allocation6 + $0x10] sm:$0xf]
        %v637 = vld [vmem:[#allocation6 + $0x14] sm:$0xf]
        %v644 = vunpack.c.l.b16 %v632
        %v645 = vunpack.c.l.b16 %v633
        %v646 = vunpack.c.l.b16 %v634
        %v647 = vunpack.c.l.b16 %v635
        %v648 = vunpack.c.l.b16 %v636
        %v649 = vunpack.c.l.b16 %v637
        %v650 = vpack.c.b16 %v645, %v644
        %v651 = vpack.c.b16 %v647, %v646
        %v652 = vpack.c.b16 %v649, %v648
        %vm656 = vcmask 392192
        %v658 = vsel %vm656, %v628, 0
        %v661 = vsel %vm656, %v629, 0
        %v664 = vsel %vm656, %v630, 0
        %v667 = vsel %vm656, %v631, 0
        %669 = vmatprep.subr.bf16.mxu0 0
        %670 = vmatpush1.bf16.msra.mxu0 %v650
        %671 = vmatprep.subr.bf16.mxu0 0
        %672 = vmatpush1.bf16.msra.mxu0 %v651
        %673 = vmatprep.subr.bf16.mxu0 0
        %674 = vmatpush1.bf16.msra.mxu0 %v652
        %675 = vmatprep.subr.bf16.mxu0 0
        %676 = vmatpush1.bf16.msra.mxu0 0
        %677 = vmatprep.subr.bf16.mxu0 0
        %678 = vmatpush1.bf16.msra.mxu0 0
        %679 = vmatprep.subr.bf16.mxu0 0
        %680 = vmatpush1.bf16.msra.mxu0 0
        %681 = vmatprep.subr.bf16.mxu0 0
        %682 = vmatpush1.bf16.msra.mxu0 0
        %683 = vmatprep.subr.bf16.mxu0 0
        %684 = vmatpush1.bf16.msra.mxu0 0
        %685 = vmatprep.subr.bf16.mxu0 0
        %686 = vmatpush1.bf16.msra.mxu0 0
        %687 = vmatprep.subr.bf16.mxu0 0
        %688 = vmatpush1.bf16.msra.mxu0 0
        %689 = vmatprep.subr.bf16.mxu0 0
        %690 = vmatpush1.bf16.msra.mxu0 0
        %691 = vmatprep.subr.bf16.mxu0 0
        %692 = vmatpush1.bf16.msra.mxu0 0
        %693 = vmatprep.subr.bf16.mxu0 0
        %694 = vmatpush1.bf16.msra.mxu0 0
        %695 = vmatprep.subr.bf16.mxu0 0
        %696 = vmatpush1.bf16.msra.mxu0 0
        %697 = vmatprep.subr.bf16.mxu0 0
        %698 = vmatpush1.bf16.msra.mxu0 0
        %699 = vmatprep.subr.bf16.mxu0 0
        %700 = vmatpush1.bf16.msra.mxu0 0
        %701 = vmatprep.mubr.bf16.mxu0 0
        %702 = vmatmul.mubr.bf16.gmra.mrb[0].mxu0 %v658
        %v703 = vpop.f32.mrb[0].mxu0
        %v704 = vadd.f32 0.0, %v703
        %v705 = vpop.f32.mrb[0].mxu0
        %v706 = vpop.f32.mrb[0].mxu0
        %v707 = vadd.f32 0.0, %v706
        %v708 = vpop.f32.mrb[0].mxu0
        %709 = vmatprep.mubr.bf16.mxu0 0
        %710 = vmatmul.mubr.bf16.gmra.mrb[0].mxu0 %v661
        %v711 = vpop.f32.mrb[0].mxu0
        %v712 = vadd.f32 0.0, %v711
        %v713 = vpop.f32.mrb[0].mxu0
        %v714 = vpop.f32.mrb[0].mxu0
        %v715 = vadd.f32 0.0, %v714
        %v716 = vpop.f32.mrb[0].mxu0
        %717 = vmatprep.mubr.bf16.mxu0 0
        %718 = vmatmul.mubr.bf16.gmra.mrb[0].mxu0 %v664
        %v719 = vpop.f32.mrb[0].mxu0
        %v720 = vadd.f32 0.0, %v719
        %v721 = vpop.f32.mrb[0].mxu0
        %v722 = vpop.f32.mrb[0].mxu0
        %v723 = vadd.f32 0.0, %v722
        %v724 = vpop.f32.mrb[0].mxu0
        %725 = vmatprep.mubr.bf16.mxu0 0
        %726 = vmatmul.mubr.bf16.gmra.mrb[0].mxu0 %v667
        %v727 = vpop.f32.mrb[0].mxu0
        %v728 = vadd.f32 0.0, %v727
        %v729 = vpop.f32.mrb[0].mxu0
        %v730 = vpop.f32.mrb[0].mxu0
        %v731 = vadd.f32 0.0, %v730
        %v732 = vpop.f32.mrb[0].mxu0
        %733 = vdwg.mxu0
        %v734 = vpack.c.bf16 %v707, %v704
        %v735 = vpack.c.bf16 %v715, %v712
        %v736 = vpack.c.bf16 %v723, %v720
        %v737 = vpack.c.bf16 %v731, %v728
        %v742 = vunpack.c.l.b16 %v734
        %v743 = vunpack.c.h.b16 %v734
        %v744 = vunpack.c.l.b16 %v735
        %v745 = vunpack.c.h.b16 %v735
        %v746 = vunpack.c.l.b16 %v736
        %v747 = vunpack.c.h.b16 %v736
        %v748 = vunpack.c.l.b16 %v737
        %v749 = vunpack.c.h.b16 %v737
        %v750 = vpack.c.b16 %v742, %v742
        %v751 = vpack.c.b16 %v743, %v743
        %v752 = vpack.c.b16 %v744, %v744
        %v753 = vpack.c.b16 %v745, %v745
        %v754 = vpack.c.b16 %v746, %v746
        %v755 = vpack.c.b16 %v747, %v747
        %v756 = vpack.c.b16 %v748, %v748
        %v757 = vpack.c.b16 %v749, %v749
        %vm766 = vcmask 27648
        %767 = vst.msk [vmem:[%s223] sm:$0xf] %vm766, %v750
        %768 = vst.msk [vmem:[%s223 + $0x4] sm:$0xf] %vm766, %v751
        %769 = vst.msk [vmem:[%s223 + $0x8] sm:$0xf] %vm766, %v752
        %770 = vst.msk [vmem:[%s223 + $0xc] sm:$0xf] %vm766, %v753
        %771 = vst.msk [vmem:[%s223 + $0x10] sm:$0xf] %vm766, %v754
        %772 = vst.msk [vmem:[%s223 + $0x14] sm:$0xf] %vm766, %v755
        %773 = vst.msk [vmem:[%s223 + $0x18] sm:$0xf] %vm766, %v756
        %774 = vst.msk [vmem:[%s223 + $0x1c] sm:$0xf] %vm766, %v757
        %v775 = vunpack.c.l.bf16 %v734
        %v776 = vunpack.c.h.bf16 %v734
        %v777 = vunpack.c.l.bf16 %v735
        %v778 = vunpack.c.h.bf16 %v735
        %v779 = vunpack.c.l.bf16 %v736
        %v780 = vunpack.c.h.bf16 %v736
        %v781 = vunpack.c.l.bf16 %v737
        %v782 = vunpack.c.h.bf16 %v737
        %vm783 = vcmask 31744
        %v784 = vsel %vm783, %v775, 0.0
        %v785 = vsel %vm783, %v776, 0.0
        %v786 = vadd.f32 %v784, %v785
        %v787 = vsel %vm783, %v777, 0.0
        %v788 = vadd.f32 %v786, %v787
        %v789 = vsel %vm783, %v778, 0.0
        %v790 = vadd.f32 %v788, %v789
        %v791 = vsel %vm783, %v779, 0.0
        %v792 = vadd.f32 %v790, %v791
        %v793 = vsel %vm783, %v780, 0.0
        %v794 = vadd.f32 %v792, %v793
        %v795 = vsel %vm783, %v781, 0.0
        %v796 = vadd.f32 %v794, %v795
        %v797 = vsel %vm783, %v782, 0.0
        %v798 = vadd.f32 %v796, %v797
        %v799 = vrot.slane %v798, 4
        %v800 = vadd.f32 %v798, %v799
        %v801 = vrot.slane %v800, 2
        %v802 = vadd.f32 %v800, %v801
        %v803 = vrot.slane %v802, 1
        %v804 = vadd.f32 %v802, %v803
        %v805 = vmul.f32 %v775, %v775
        %v806 = vmul.f32 %v776, %v776
        %v807 = vmul.f32 %v777, %v777
        %v808 = vmul.f32 %v778, %v778
        %v809 = vmul.f32 %v779, %v779
        %v810 = vmul.f32 %v780, %v780
        %v811 = vmul.f32 %v781, %v781
        %v812 = vmul.f32 %v782, %v782
        %v813 = vsel %vm783, %v805, 0.0
        %v814 = vsel %vm783, %v806, 0.0
        %v815 = vadd.f32 %v813, %v814
        %v816 = vsel %vm783, %v807, 0.0
        %v817 = vadd.f32 %v815, %v816
        %v818 = vsel %vm783, %v808, 0.0
        %v819 = vadd.f32 %v817, %v818
        %v820 = vsel %vm783, %v809, 0.0
        %v821 = vadd.f32 %v819, %v820
        %v822 = vsel %vm783, %v810, 0.0
        %v823 = vadd.f32 %v821, %v822
        %v824 = vsel %vm783, %v811, 0.0
        %v825 = vadd.f32 %v823, %v824
        %v826 = vsel %vm783, %v812, 0.0
        %v827 = vadd.f32 %v825, %v826
        %v828 = vrot.slane %v827, 4
        %v829 = vadd.f32 %v827, %v828
        %v830 = vrot.slane %v829, 2
        %v831 = vadd.f32 %v829, %v830
        %v832 = vrot.slane %v831, 1
        %v833 = vadd.f32 %v831, %v832
        %vm834 = vcmask 1040384
        %v835 = vsel %vm834, %v804, %v833
        %vm836 = vcmask 25600
        %837 = vst.msk [vmem:[%s230] sm:$0x3] %vm836, %v835
        %s838 = sand.u32 %s94, 1
        %s839 = scalar_lea.sflag [#allocation5], %s838
        %s840 = sand.u32 %s94, 1
        %s841 = smul.addr %s840, 32
        %s842 = scalar_lea.vmem [#allocation8], %s841
        %s843 = sand.u32 %s122, 1
        %s844 = scalar_lea.sflag [#allocation10], %s843
        %s845 = sand.u32 %s122, 1
        %s846 = smul.addr %s845, 2
        %s847 = scalar_lea.vmem [#allocation9], %s846
        // Predicated region
        $region37: #{conv_stem_forward.3} parent=27 // pred_check
          %p848 = pneg %p104
        $region38: #{conv_stem_forward.3} parent=27 // pred_check_branch
          %850 = sbr.rel (%p848) target = $region40
        $region39: #{conv_stem_forward.3} parent=27 // pred_region
          %s852 = ssub.s32 512, 512
          %853 = vsyncadd %s839, %s852
          %s854 = smul.addr %s30, 8
          %s855 = smul.addr %s29, 8
          %s856 = sadd.s32 %s854, %s855
          %s857 = smul.addr %s856, 64
          %s858 = scalar_lea.hbm %s2, %s857
          %s859 = sshll.u32 %s842, 4
          %s860 = int_to_ptr.vmem [resolvable:$true] %s859
          %865 = dma.vmem_to_hbm [thread:$0]  %s860, 512, %s858, %s839, 64, 64, 4
        $region40: #{conv_stem_forward.3} parent=27 // pred_fallthru
          _
        // Predicated region
        $region41: #{conv_stem_forward.3} parent=27 // pred_check
          %p866 = pneg %p132
        $region42: #{conv_stem_forward.3} parent=27 // pred_check_branch
          %868 = sbr.rel (%p866) target = $region44
        $region43: #{conv_stem_forward.3} parent=27 // pred_region
          %s870 = ssub.s32 32, 32
          %871 = vsyncadd %s844, %s870
          %s872 = sadd.s32 %s30, %s29
          %s873 = smul.addr %s872, 32
          %s874 = scalar_lea.hbm %s3, %s873
          %s876 = sshll.u32 %s847, 4
          %s877 = int_to_ptr.vmem [resolvable:$true] %s876
          %879 = dma.vmem_to_hbm [thread:$0]  %s877, 32, %s874, %s844
        $region44: #{conv_stem_forward.3} parent=27 // pred_fallthru
          _
      $region28: #{conv_stem_forward.3} parent=5 // pred_fallthru
        _
      %p880 = scmp.le.s32.totalorder 2, %s20
      // Predicated region
      $region45: #{conv_stem_forward.3} parent=5 // pred_check
        %p881 = pneg %p880
      $region46: #{conv_stem_forward.3} parent=5 // pred_check_branch
        %883 = sbr.rel (%p881) target = $region48
      $region47: #{conv_stem_forward.3} parent=5 // pred_region
        %s884 = ssub.s32 %s20, 2
        // Predicated region
        $region49: #{conv_stem_forward.3} parent=47 // pred_check
          %p885 = pneg %p110
        $region50: #{conv_stem_forward.3} parent=47 // pred_check_branch
          %887 = sbr.rel (%p885) target = $region52
        $region51: #{conv_stem_forward.3} parent=47 // pred_region
          %s888 = sand.u32 %s95, 1
          %s889 = scalar_lea.sflag [#allocation5], %s888
          %s890 = sand.u32 %s95, 1
          %s891 = smul.addr %s890, 32
          %s892 = scalar_lea.vmem [#allocation8], %s891
          %893 = dma.done %s889, 512
        $region52: #{conv_stem_forward.3} parent=47 // pred_fallthru
          _
        // Predicated region
        $region53: #{conv_stem_forward.3} parent=47 // pred_check
          %p894 = pneg %p138
        $region54: #{conv_stem_forward.3} parent=47 // pred_check_branch
          %896 = sbr.rel (%p894) target = $region56
        $region55: #{conv_stem_forward.3} parent=47 // pred_region
          %s897 = sand.u32 %s123, 1
          %s898 = scalar_lea.sflag [#allocation10], %s897
          %s899 = sand.u32 %s123, 1
          %s900 = smul.addr %s899, 2
          %s901 = scalar_lea.vmem [#allocation9], %s900
          %902 = dma.done %s898, 32
        $region56: #{conv_stem_forward.3} parent=47 // pred_fallthru
          _
      $region48: #{conv_stem_forward.3} parent=5 // pred_fallthru
        _
    $region6: #{conv_stem_forward.3} parent=1 // loop_footer
      %s24 = sadd.s32 1, %s20
    $region7: #{conv_stem_forward.3} parent=1 // loop_footer_branch
      %19 = sbr.rel target = $region3
    $region8: #{conv_stem_forward.3} parent=1 // loop_exit
      _
    %903 = vsyncpa [#allocation4], 1
    %s904 = scalar_lea.sflag [#allocation4], 1
    %905 = vsyncpa %s904, 1
    %906 = vsyncpa [#allocation7], 1
    %907 = vsyncpa [#allocation5], 1
    %s908 = scalar_lea.sflag [#allocation5], 1
    %909 = vsyncpa %s908, 1
    %910 = vsyncpa [#allocation10], 1
    %s911 = scalar_lea.sflag [#allocation10], 1
    %912 = vsyncpa %s911, 1

// kernel: conv_stem_forward.4
$region0: #{conv_stem_forward.4}
  #allocation0 [shape = 'u32[]', space=smem, size = 0x4, offset = 0x4, fixed_abs, tag = 'smem constant byte address 0x4 - core index']
  #allocation1 [shape = 'u32[144,128]{1,0:T(1,128)}', space=vmem, size = 0x12000, scoped, tag = 'internal scratch']
  #allocation2 [shape = 'bf16[16,64]{1,0:T(16,128)(2,1)}', space=vmem, size = 0x1000, scoped, tag = 'scratch operand']
  %s0 = inlined_call_operand.hbm [shape: bf16[2,5,5,16], index: 0, kind: input, shape index: {}]
  %s1 = inlined_call_operand.hbm [shape: bf16[64,8], index: 1, kind: input, shape index: {}]
  %s2 = inlined_call_operand.hbm [shape: bf16[2,1,16,8], index: 2, kind: output, shape index: {0}]
  %s3 = inlined_call_operand.hbm [shape: f32[2,1,2,8], index: 3, kind: output, shape index: {1}]
  %4 = xla_tuple %s2, %s3
  %s5 = sld [smem:[#allocation0]]
  $region57: #{conv_stem_forward.4} parent=0
    _
  %s7 = ssub.s32 1, %s5
  %s8 = scalar_select 0, %s7, %s5
  $region1: #{conv_stem_forward.4} parent=0
    #allocation3 [shape = 'u8[20480]{0}', space=vmem, size = 0x5000, scoped, tag = 'input window, operand 0']
    #allocation4 [shape = 's32[2]{0}', space=sflag, size = 0x8, scoped, tag = 'scoped memory for conv_stem_forward.4']
    #allocation5 [shape = 's32[2]{0}', space=sflag, size = 0x8, scoped, tag = 'scoped memory for conv_stem_forward.4']
    #allocation6 [shape = 'u8[16384]{0}', space=vmem, size = 0x4000, scoped, tag = 'input window, operand 1, single buffered']
    #allocation7 [shape = 's32[1]{0}', space=sflag, size = 0x4, scoped, tag = 'scoped memory for conv_stem_forward.4']
    #allocation8 [shape = 'u8[8192]{0}', space=vmem, size = 0x2000, scoped, tag = 'output window, operand 0']
    #allocation9 [shape = 'u8[2048]{0}', space=vmem, size = 0x800, scoped, tag = 'output window, operand 1']
    #allocation10 [shape = 's32[2]{0}', space=sflag, size = 0x8, scoped, tag = 'scoped memory for conv_stem_forward.4']
    %9 = vsyncpa [#allocation4], 0
    %s10 = scalar_lea.sflag [#allocation4], 1
    %11 = vsyncpa %s10, 0
    %12 = vsyncpa [#allocation7], 0
    %13 = vsyncpa [#allocation5], 0
    %s14 = scalar_lea.sflag [#allocation5], 1
    %15 = vsyncpa %s14, 0
    %16 = vsyncpa [#allocation10], 0
    %s17 = scalar_lea.sflag [#allocation10], 1
    %18 = vsyncpa %s17, 0
    loop: start=0, step=1, limit=4
    $region2: #{conv_stem_forward.4} parent=1 // loop_pre_header
      _
    $region3: #{conv_stem_forward.4} parent=1 // loop_header
      %s20 = sphi 0, %s24
      %p21 = scmp.ge.s32.totalorder %s20, 4
      %s27 = sphi 0, %s39
      %s28 = sphi 0, %s35
      %s29 = sphi 0, %s27
      %s30 = sphi 0, %s28
      %s31 = sphi 0, %s29
      %s32 = sphi 0, %s30
      %s42 = sphi 0, %s44
      %s45 = sphi 0, %s42
      %s46 = sphi 0, %s45
      %s62 = sphi 0, %s46
      %s66 = sphi 0, %s66
      %s68 = sphi 0, %s66
      %s69 = sphi 0, %s68
      %s83 = sphi 0, %s69
      %s91 = sphi 0, %s93
      %s94 = sphi 0, %s91
      %s95 = sphi 0, %s94
      %s111 = sphi 0, %s95
      %s119 = sphi 0, %s121
      %s122 = sphi 0, %s119
      %s123 = sphi 0, %s122
      %s139 = sphi 0, %s123
    $region4: #{conv_stem_forward.4} parent=1 // loop_header_branch
      %23 = sbr.rel (%p21) target = $region8
    $region5: #{conv_stem_forward.4} parent=1 // loop_body
      %s25 = ssub.s32 %s20, 1
      %s26 = ssub.s32 %s20, 2
      %s33 = sadd.s32 1, %s28
      %p34 = scmp.ge.s32.totalorder %s33, 1
      %s35 = scalar_select %p34, 0, %s33
      %s36 = sadd.s32 1, %s27
      %s37 = scalar_select %p34, %s36, %s27
      %p38 = scmp.ge.s32.totalorder %s37, 2
      %s39 = scalar_select %p38, 0, %s37
      %s40 = ssub.s32 %s27, %s39
      %p41 = scmp.eq.s32.totalorder %s40, 0
      %s43 = sadd.s32 %s42, 1
      %s44 = scalar_select %p41, %s42, %s43
      %p47 = pneg %p41
      %p48 = scmp.eq.s32.totalorder %s20, 1
      %p49 = por %p47, %p48
      %p50 = scmp.ne.s32.totalorder %s42, %s45
      %p51 = scmp.eq.s32.totalorder %s20, 0
      %p52 = por %p50, %p51
      %p53 = scmp.ne.s32.totalorder %s42, %s45
      %p54 = scmp.eq.s32.totalorder %s25, 1
      %p55 = por %p53, %p54
      %p56 = scmp.ne.s32.totalorder %s45, %s46
      %p57 = scmp.eq.s32.totalorder %s25, 0
      %p58 = por %p56, %p57
      %p59 = scmp.ne.s32.totalorder %s45, %s46
      %p60 = scmp.eq.s32.totalorder %s26, 1
      %p61 = por %p59, %p60
      %p63 = scmp.ne.s32.totalorder %s46, %s62
      %p64 = scmp.eq.s32.totalorder %s26, 0
      %p65 = por %p63, %p64
      %s67 = sadd.s32 %s66, 1
      %p70 = scmp.eq.s32.totalorder %s20, 1
      %p71 = scmp.ne.s32.totalorder %s66, %s68
      %p72 = scmp.eq.s32.totalorder %s20, 0
      %p73 = por %p71, %p72
      %p74 = scmp.ne.s32.totalorder %s66, %s68
      %p75 = scmp.eq.s32.totalorder %s25, 1
      %p76 = por %p74, %p75
      %p77 = scmp.ne.s32.totalorder %s68, %s69
      %p78 = scmp.eq.s32.totalorder %s25, 0
      %p79 = por %p77, %p78
      %p80 = scmp.ne.s32.totalorder %s68, %s69
      %p81 = scmp.eq.s32.totalorder %s26, 1
      %p82 = por %p80, %p81
      %p84 = scmp.ne.s32.totalorder %s69, %s83
      %p85 = scmp.eq.s32.totalorder %s26, 0
      %p86 = por %p84, %p85
      %s87 = ssub.s32 %s27, %s39
      %s88 = ssub.s32 %s28, %s35
      %s89 = sor.u32 %s87, %s88
      %p90 = scmp.eq.s32.totalorder %s89, 0
      %s92 = sadd.s32 %s91, 1
      %s93 = scalar_select %p90, %s91, %s92
      %p96 = pneg %p90
      %p97 = scmp.eq.s32.totalorder %s20, 1
      %p98 = por %p96, %p97
      %p99 = scmp.ne.s32.totalorder %s91, %s94
      %p100 = scmp.eq.s32.totalorder %s20, 0
      %p101 = por %p99, %p100
      %p102 = scmp.ne.s32.totalorder %s91, %s94
      %p103 = scmp.eq.s32.totalorder %s25, 1
      %p104 = por %p102, %p103
      %p105 = scmp.ne.s32.totalorder %s94, %s95
      %p106 = scmp.eq.s32.totalorder %s25, 0
      %p107 = por %p105, %p106
      %p108 = scmp.ne.s32.totalorder %s94, %s95
      %p109 = scmp.eq.s32.totalorder %s26, 1
      %p110 = por %p108, %p109
      %p112 = scmp.ne.s32.totalorder %s95, %s111
      %p113 = scmp.eq.s32.totalorder %s26, 0
      %p114 = por %p112, %p113
      %s115 = ssub.s32 %s27, %s39
      %s116 = ssub.s32 %s28, %s35
      %s117 = sor.u32 %s115, %s116
      %p118 = scmp.eq.s32.totalorder %s117, 0
      %s120 = sadd.s32 %s119, 1
      %s121 = scalar_select %p118, %s119, %s120
      %p124 = pneg %p118
      %p125 = scmp.eq.s32.totalorder %s20, 1
      %p126 = por %p124, %p125
      %p127 = scmp.ne.s32.totalorder %s119, %s122
      %p128 = scmp.eq.s32.totalorder %s20, 0
      %p129 = por %p127, %p128
      %p130 = scmp.ne.s32.totalorder %s119, %s122
      %p131 = scmp.eq.s32.totalorder %s25, 1
      %p132 = por %p130, %p131
      %p133 = scmp.ne.s32.totalorder %s122, %s123
      %p134 = scmp.eq.s32.totalorder %s25, 0
      %p135 = por %p133, %p134
      %p136 = scmp.ne.s32.totalorder %s122, %s123
      %p137 = scmp.eq.s32.totalorder %s26, 1
      %p138 = por %p136, %p137
      %p140 = scmp.ne.s32.totalorder %s123, %s139
      %p141 = scmp.eq.s32.totalorder %s26, 0
      %p142 = por %p140, %p141
      %p143 = scmp.le.s32.totalorder 1, %s20
      %p144 = scmp.lt.s32.totalorder %s20, 3
      %p145 = pnand %p143, %p144
      %p146 = pneg %p145
      // Predicated region
      $region9: #{conv_stem_forward.4} parent=5 // pred_check
        _
      $region10: #{conv_stem_forward.4} parent=5 // pred_check_branch
        %148 = sbr.rel (%p145) target = $region12
      $region11: #{conv_stem_forward.4} parent=5 // pred_region
        %s149 = ssub.s32 %s20, 1
        // Predicated region
        $region13: #{conv_stem_forward.4} parent=11 // pred_check
          %p150 = pneg %p79
        $region14: #{conv_stem_forward.4} parent=11 // pred_check_branch
          %152 = sbr.rel (%p150) target = $region16
        $region15: #{conv_stem_forward.4} parent=11 // pred_region
          %s154 = ssub.s32 512, 512
          %155 = vsyncadd [#allocation7], %s154
          %s156 = sshll.u32 [#allocation6], 4
          %s157 = int_to_ptr.vmem [resolvable:$true] %s156
          %162 = dma.hbm_to_vmem [thread:$0]  %s1, 512, %s157, [#allocation7], 64, 64, 4
        $region16: #{conv_stem_forward.4} parent=11 // pred_fallthru
          _
      $region12: #{conv_stem_forward.4} parent=5 // pred_fallthru
        _
      %p163 = scmp.lt.s32.totalorder %s20, 2
      // Predicated region
      $region17: #{conv_stem_forward.4} parent=5 // pred_check
        %p164 = pneg %p163
      $region18: #{conv_stem_forward.4} parent=5 // pred_check_branch
        %166 = sbr.rel (%p164) target = $region20
      $region19: #{conv_stem_forward.4} parent=5 // pred_region
        // Predicated region
        $region21: #{conv_stem_forward.4} parent=19 // pred_check
          %p167 = pneg %p52
        $region22: #{conv_stem_forward.4} parent=19 // pred_check_branch
          %169 = sbr.rel (%p167) target = $region24
        $region23: #{conv_stem_forward.4} parent=19 // pred_region
          %s170 = sand.u32 %s42, 1
          %s171 = scalar_lea.sflag [#allocation4], %s170
          %s172 = sand.u32 %s42, 1
          %s173 = smul.addr %s172, 20
          %s174 = scalar_lea.vmem [#allocation3], %s173
          %s176 = ssub.s32 320, 320
          %177 = vsyncadd %s171, %s176
          %s178 = smul.addr %s27, 5
          %s179 = smul.addr %s178, 64
          %s180 = scalar_lea.hbm %s0, %s179
          %s181 = sshll.u32 %s174, 4
          %s182 = int_to_ptr.vmem [resolvable:$true] %s181
          %187 = dma.hbm_to_vmem [thread:$0]  %s180, 320, %s182, %s171, 64, 64, 4
        $region24: #{conv_stem_forward.4} parent=19 // pred_fallthru
          _
      $region20: #{conv_stem_forward.4} parent=5 // pred_fallthru
        _
      %p188 = scmp.le.s32.totalorder 1, %s20
      %p189 = scmp.lt.s32.totalorder %s20, 3
      %p190 = pnand %p188, %p189
      %p191 = pneg %p190
      // Predicated region
      $region25: #{conv_stem_forward.4} parent=5 // pred_check
        _
      $region26: #{conv_stem_forward.4} parent=5 // pred_check_branch
        %193 = sbr.rel (%p190) target = $region28
      $region27: #{conv_stem_forward.4} parent=5 // pred_region
        %s194 = ssub.s32 %s20, 1
        %s195 = sand.u32 %s45, 1
        %s196 = scalar_lea.sflag [#allocation4], %s195
        %s197 = sand.u32 %s45, 1
        %s198 = smul.addr %s197, 20
        %s199 = scalar_lea.vmem [#allocation3], %s198
        // Predicated region
        $region29: #{conv_stem_forward.4} parent=27 // pred_check
          %p200 = pneg %p58
        $region30: #{conv_stem_forward.4} parent=27 // pred_check_branch
          %202 = sbr.rel (%p200) target = $region32
        $region31: #{conv_stem_forward.4} parent=27 // pred_region
          %203 = dma.done %s196, 320
        $region32: #{conv_stem_forward.4} parent=27 // pred_fallthru
          _
        // Predicated region
        $region33: #{conv_stem_forward.4} parent=27 // pred_check
          %p204 = pneg %p79
        $region34: #{conv_stem_forward.4} parent=27 // pred_check_branch
          %206 = sbr.rel (%p204) target = $region36
        $region35: #{conv_stem_forward.4} parent=27 // pred_region
          %207 = dma.done [#allocation7], 512
        $region36: #{conv_stem_forward.4} parent=27 // pred_fallthru
          _
        %s208 = sand.u32 %s45, 1
        %s209 = scalar_lea.sflag [#allocation4], %s208
        %s210 = sand.u32 %s45, 1
        %s211 = smul.addr %s210, 20
        %s212 = scalar_lea.vmem [#allocation3], %s211
        %p213 = pneg %p58
        %p214 = pneg %p55
        %p215 = pneg %p79
        %p216 = pneg %p76
        %p217 = pneg %p107
        %p218 = pneg %p104
        %s219 = sand.u32 %s94, 1
        %s220 = scalar_lea.sflag [#allocation5], %s219
        %s221 = sand.u32 %s94, 1
        %s222 = smul.addr %s221, 8
        %s223 = scalar_lea.vmem [#allocation8], %s222
        %p224 = pneg %p135
        %p225 = pneg %p132
        %s226 = sand.u32 %s122, 1
        %s227 = scalar_lea.sflag [#allocation10], %s226
        %s228 = sand.u32 %s122, 1
        %s229 = smul.addr %s228, 2
        %s230 = scalar_lea.vmem [#allocation9], %s229
        %s232 = smul.u32 %s30, 4
        %s233 = smul.addr %s232, 4
        %s234 = scalar_lea.vmem %s199, %s233 [#allocation3]
        %v235 = vld [vmem:[%s234] sm:$0x7]
        %s236 = sadd.s32 %s232, 1
        %s237 = smul.addr %s236, 4
        %s238 = scalar_lea.vmem %s199, %s237 [#allocation3]
        %v239 = vld [vmem:[%s238] sm:$0x7]
        %vm240 = vcmask 123904
        %241 = vst.msk [vmem:[#allocation2] sm:$0x3] %vm240, %v235
        %v243 = vunpack.c.l.b16 %v235
        %v244 = vpack.c.b16 %v243, %v243
        %v246 = vshrl.u32 %v244, 16
        %v248 = vshll.u32 %v244, 16
        %v250 = vrot.slane %v248, 1
        %v251 = vor.u32 %v246, %v250
        %252 = vrot.lane.b32.xlu0 %v251, 16
        %v253 = vpop.permute.xlu0 %252
        %vm255 = vcmask 255104
        %256 = vst.msk [vmem:[#allocation2] sm:$0x3] %vm255, %v253
        %v258 = vunpack.c.l.b16 %v239
        %v259 = vpack.c.b16 %v258, %v258
        %260 = vrot.lane.b32.xlu0 %v259, 32
        %v261 = vpop.permute.xlu0 %260
        %vm263 = vcmask 386304
        %264 = vst.msk [vmem:[#allocation2] sm:$0x3] %vm263, %v261
        %v266 = vshrl.u32 %v259, 16
        %v268 = vshll.u32 %v259, 16
        %v270 = vrot.slane %v268, 1
        %v271 = vor.u32 %v266, %v270
        %272 = vrot.lane.b32.xlu0 %v271, 48
        %v273 = vpop.permute.xlu0 %272
        %vm275 = vcmask 517504
        %276 = vst.msk [vmem:[#allocation2] sm:$0x3] %vm275, %v273
        %v277 = vld [vmem:[%s238] sm:$0x7]
        %s278 = sadd.s32 %s232, 2
        %s279 = smul.addr %s278, 4
        %s280 = scalar_lea.vmem %s199, %s279 [#allocation3]
        %v281 = vld [vmem:[%s280] sm:$0x7]
        %v283 = vunpack.c.l.b16 %v277
        %v284 = vpack.c.b16 %v283, %v283
        %v285 = vrot.slane %v284, 6
        %vm287 = vcmask 125954
        %288 = vst.msk [vmem:[#allocation2] sm:$0xc] %vm287, %v285
        %v290 = vshrl.u32 %v284, 16
        %v292 = vrot.slane %v290, 6
        %v293 = vshll.u32 %v284, 16
        %v295 = vrot.slane %v293, 7
        %v296 = vor.u32 %v292, %v295
        %297 = vrot.lane.b32.xlu0 %v296, 16
        %v298 = vpop.permute.xlu0 %297
        %vm300 = vcmask 257154
        %301 = vst.msk [vmem:[#allocation2] sm:$0xc] %vm300, %v298
        %v303 = vunpack.c.l.b16 %v281
        %v304 = vpack.c.b16 %v303, %v303
        %v305 = vrot.slane %v304, 6
        %306 = vrot.lane.b32.xlu0 %v305, 32
        %v307 = vpop.permute.xlu0 %306
        %vm309 = vcmask 388354
        %310 = vst.msk [vmem:[#allocation2] sm:$0xc] %vm309, %v307
        %v312 = vshrl.u32 %v304, 16
        %v314 = vrot.slane %v312, 6
        %v315 = vshll.u32 %v304, 16
        %v317 = vrot.slane %v315, 7
        %v318 = vor.u32 %v314, %v317
        %319 = vrot.lane.b32.xlu0 %v318, 48
        %v320 = vpop.permute.xlu0 %319
        %vm322 = vcmask 519554
        %323 = vst.msk [vmem:[#allocation2] sm:$0xc] %vm322, %v320
        %v324 = vld [vmem:[%s280] sm:$0x7]
        %s325 = sadd.s32 %s232, 3
        %s326 = smul.addr %s325, 4
        %s327 = scalar_lea.vmem %s199, %s326 [#allocation3]
        %v328 = vld [vmem:[%s327] sm:$0x7]
        %v330 = vunpack.c.l.b16 %v324
        %v331 = vpack.c.b16 %v330, %v330
        %vm333 = vcmask 128004
        %334 = vst.msk [vmem:[#allocation2] sm:$0x30] %vm333, %v331
        %v336 = vshrl.u32 %v331, 16
        %v338 = vrot.slane %v336, 4
        %v339 = vshll.u32 %v331, 16
        %v341 = vrot.slane %v339, 5
        %v342 = vor.u32 %v338, %v341
        %343 = vrot.lane.b32.xlu0 %v342, 16
        %v344 = vpop.permute.xlu0 %343
        %vm346 = vcmask 259204
        %347 = vst.msk [vmem:[#allocation2] sm:$0x30] %vm346, %v344
        %v349 = vunpack.c.l.b16 %v328
        %v350 = vpack.c.b16 %v349, %v349
        %351 = vrot.lane.b32.xlu0 %v350, 32
        %v352 = vpop.permute.xlu0 %351
        %vm354 = vcmask 390404
        %355 = vst.msk [vmem:[#allocation2] sm:$0x30] %vm354, %v352
        %v357 = vshrl.u32 %v350, 16
        %v359 = vrot.slane %v357, 4
        %v360 = vshll.u32 %v350, 16
        %v362 = vrot.slane %v360, 5
        %v363 = vor.u32 %v359, %v362
        %364 = vrot.lane.b32.xlu0 %v363, 48
        %v365 = vpop.permute.xlu0 %364
        %vm367 = vcmask 521604
        %368 = vst.msk [vmem:[#allocation2] sm:$0x30] %vm367, %v365
        %v369 = vld [vmem:[%s327] sm:$0x7]
        %s370 = sadd.s32 %s232, 4
        %s371 = smul.addr %s370, 4
        %s372 = scalar_lea.vmem %s199, %s371 [#allocation3]
        %v373 = vld [vmem:[%s372] sm:$0x7]
        %v375 = vunpack.c.l.b16 %v369
        %v376 = vpack.c.b16 %v375, %v375
        %v377 = vrot.slane %v376, 2
        %vm379 = vcmask 130054
        %380 = vst.msk [vmem:[#allocation2] sm:$0xc0] %vm379, %v377
        %v382 = vshrl.u32 %v376, 16
        %v384 = vrot.slane %v382, 2
        %v385 = vshll.u32 %v376, 16
        %v387 = vrot.slane %v385, 3
        %v388 = vor.u32 %v384, %v387
        %389 = vrot.lane.b32.xlu0 %v388, 16
        %v390 = vpop.permute.xlu0 %389
        %vm392 = vcmask 261254
        %393 = vst.msk [vmem:[#allocation2] sm:$0xc0] %vm392, %v390
        %v395 = vunpack.c.l.b16 %v373
        %v396 = vpack.c.b16 %v395, %v395
        %v397 = vrot.slane %v396, 2
        %398 = vrot.lane.b32.xlu0 %v397, 32
        %v399 = vpop.permute.xlu0 %398
        %vm401 = vcmask 392454
        %402 = vst.msk [vmem:[#allocation2] sm:$0xc0] %vm401, %v399
        %v404 = vshrl.u32 %v396, 16
        %v406 = vrot.slane %v404, 2
        %v407 = vshll.u32 %v396, 16
        %v409 = vrot.slane %v407, 3
        %v410 = vor.u32 %v406, %v409
        %411 = vrot.lane.b32.xlu0 %v410, 48
        %v412 = vpop.permute.xlu0 %411
        %vm414 = vcmask 523654
        %415 = vst.msk [vmem:[#allocation2] sm:$0xc0] %vm414, %v412
        %v416 = vld [vmem:[#allocation2] sm:$0xff]
        %v417 = vld [vmem:[#allocation6] sm:$0xf]
        %v418 = vld [vmem:[#allocation6 + $0x4] sm:$0xf]
        %v419 = vld [vmem:[#allocation6 + $0x8] sm:$0xf]
        %v420 = vld [vmem:[#allocation6 + $0xc] sm:$0xf]
        %v421 = vld [vmem:[#allocation6 + $0x10] sm:$0xf]
        %v422 = vld [vmem:[#allocation6 + $0x14] sm:$0xf]
        %v423 = vld [vmem:[#allocation6 + $0x18] sm:$0xf]
        %v424 = vld [vmem:[#allocation6 + $0x1c] sm:$0xf]
        %v433 = vunpack.c.l.b16 %v417
        %v434 = vunpack.c.l.b16 %v418
        %v435 = vunpack.c.l.b16 %v419
        %v436 = vunpack.c.l.b16 %v420
        %v437 = vunpack.c.l.b16 %v421
        %v438 = vunpack.c.l.b16 %v422
        %v439 = vunpack.c.l.b16 %v423
        %v440 = vunpack.c.l.b16 %v424
        %v441 = vpack.c.b16 %v434, %v433
        %v442 = vpack.c.b16 %v436, %v435
        %v443 = vpack.c.b16 %v438, %v437
        %v444 = vpack.c.b16 %v440, %v439
        %vm449 = vcmask 523264
        %v451 = vsel %vm449, %v416, 0
        %453 = vmatprep.subr.bf16.mxu0 0
        %454 = vmatpush1.bf16.msra.mxu0 %v441
        %455 = vmatprep.subr.bf16.mxu0 0
        %456 = vmatpush1.bf16.msra.mxu0 %v442
        %457 = vmatprep.subr.bf16.mxu0 0
        %458 = vmatpush1.bf16.msra.mxu0 %v443
        %459 = vmatprep.subr.bf16.mxu0 0
        %460 = vmatpush1.bf16.msra.mxu0 %v444
        %461 = vmatprep.subr.bf16.mxu0 0
        %462 = vmatpush1.bf16.msra.mxu0 0
        %463 = vmatprep.subr.bf16.mxu0 0
        %464 = vmatpush1.bf16.msra.mxu0 0
        %465 = vmatprep.subr.bf16.mxu0 0
        %466 = vmatpush1.bf16.msra.mxu0 0
        %467 = vmatprep.subr.bf16.mxu0 0
        %468 = vmatpush1.bf16.msra.mxu0 0
        %469 = vmatprep.subr.bf16.mxu0 0
        %470 = vmatpush1.bf16.msra.mxu0 0
        %471 = vmatprep.subr.bf16.mxu0 0
        %472 = vmatpush1.bf16.msra.mxu0 0
        %473 = vmatprep.subr.bf16.mxu0 0
        %474 = vmatpush1.bf16.msra.mxu0 0
        %475 = vmatprep.subr.bf16.mxu0 0
        %476 = vmatpush1.bf16.msra.mxu0 0
        %477 = vmatprep.subr.bf16.mxu0 0
        %478 = vmatpush1.bf16.msra.mxu0 0
        %479 = vmatprep.subr.bf16.mxu0 0
        %480 = vmatpush1.bf16.msra.mxu0 0
        %481 = vmatprep.subr.bf16.mxu0 0
        %482 = vmatpush1.bf16.msra.mxu0 0
        %483 = vmatprep.subr.bf16.mxu0 0
        %484 = vmatpush1.bf16.msra.mxu0 0
        %485 = vmatprep.mubr.bf16.mxu0 0
        %486 = vmatmul.mubr.bf16.gmra.mrb[0].mxu0 %v451
        %v487 = vpop.f32.mrb[0].mxu0
        %v488 = vadd.f32 0.0, %v487
        %v489 = vpop.f32.mrb[0].mxu0
        %v490 = vpop.f32.mrb[0].mxu0
        %v491 = vadd.f32 0.0, %v490
        %v492 = vpop.f32.mrb[0].mxu0
        %493 = vdwg.mxu0
        %v494 = vpack.c.bf16 %v491, %v488
        %v496 = vunpack.c.l.b16 %v494
        %v497 = vunpack.c.h.b16 %v494
        %v498 = vpack.c.b16 %v496, %v496
        %v499 = vpack.c.b16 %v497, %v497
        %vm502 = vcmask 60416
        %503 = vst.msk [vmem:[%s223] sm:$0xf] %vm502, %v498
        %504 = vst.msk [vmem:[%s223 + $0x4] sm:$0xf] %vm502, %v499
        %v505 = vunpack.c.l.bf16 %v494
        %v506 = vunpack.c.h.bf16 %v494
        %vm507 = vcmask 64512
        %v508 = vsel %vm507, %v505, 0.0
        %v509 = vsel %vm507, %v506, 0.0
        %v510 = vadd.f32 %v508, %v509
        %v511 = vrot.slane %v510, 4
        %v512 = vadd.f32 %v510, %v511
        %v513 = vrot.slane %v512, 2
        %v514 = vadd.f32 %v512, %v513
        %v515 = vrot.slane %v514, 1
        %v516 = vadd.f32 %v514, %v515
        %v517 = vmul.f32 %v505, %v505
        %v518 = vmul.f32 %v506, %v506
        %v519 = vsel %vm507, %v517, 0.0
        %v520 = vsel %vm507, %v518, 0.0
        %v521 = vadd.f32 %v519, %v520
        %v522 = vrot.slane %v521, 4
        %v523 = vadd.f32 %v521, %v522
        %v524 = vrot.slane %v523, 2
        %v525 = vadd.f32 %v523, %v524
        %v526 = vrot.slane %v525, 1
        %v527 = vadd.f32 %v525, %v526
        %vm528 = vcmask 1040384
        %v529 = vsel %vm528, %v516, %v527
        %vm530 = vcmask 58368
        %531 = vst.msk [vmem:[%s230] sm:$0x3] %vm530, %v529
        %s532 = sand.u32 %s94, 1
        %s533 = scalar_lea.sflag [#allocation5], %s532
        %s534 = sand.u32 %s94, 1
        %s535 = smul.addr %s534, 8
        %s536 = scalar_lea.vmem [#allocation8], %s535
        %s537 = sand.u32 %s122, 1
        %s538 = scalar_lea.sflag [#allocation10], %s537
        %s539 = sand.u32 %s122, 1
        %s540 = smul.addr %s539, 2
        %s541 = scalar_lea.vmem [#allocation9], %s540
        // Predicated region
        $region37: #{conv_stem_forward.4} parent=27 // pred_check
          %p542 = pneg %p104
        $region38: #{conv_stem_forward.4} parent=27 // pred_check_branch
          %544 = sbr.rel (%p542) target = $region40
        $region39: #{conv_stem_forward.4} parent=27 // pred_region
          %s546 = ssub.s32 128, 128
          %547 = vsyncadd %s533, %s546
          %s548 = smul.addr %s30, 2
          %s549 = smul.addr %s29, 2
          %s550 = sadd.s32 %s548, %s549
          %s551 = smul.addr %s550, 64
          %s552 = scalar_lea.hbm %s2, %s551
          %s553 = sshll.u32 %s536, 4
          %s554 = int_to_ptr.vmem [resolvable:$true] %s553
          %559 = dma.vmem_to_hbm [thread:$0]  %s554, 128, %s552, %s533, 64, 64, 4
        $region40: #{conv_stem_forward.4} parent=27 // pred_fallthru
          _
        // Predicated region
        $region41: #{conv_stem_forward.4} parent=27 // pred_check
          %p560 = pneg %p132
        $region42: #{conv_stem_forward.4} parent=27 // pred_check_branch
          %562 = sbr.rel (%p560) target = $region44
        $region43: #{conv_stem_forward.4} parent=27 // pred_region
          %s564 = ssub.s32 32, 32
          %565 = vsyncadd %s538, %s564
          %s566 = sadd.s32 %s30, %s29
          %s567 = smul.addr %s566, 32
          %s568 = scalar_lea.hbm %s3, %s567
          %s570 = sshll.u32 %s541, 4
          %s571 = int_to_ptr.vmem [resolvable:$true] %s570
          %573 = dma.vmem_to_hbm [thread:$0]  %s571, 32, %s568, %s538
        $region44: #{conv_stem_forward.4} parent=27 // pred_fallthru
          _
      $region28: #{conv_stem_forward.4} parent=5 // pred_fallthru
        _
      %p574 = scmp.le.s32.totalorder 2, %s20
      // Predicated region
      $region45: #{conv_stem_forward.4} parent=5 // pred_check
        %p575 = pneg %p574
      $region46: #{conv_stem_forward.4} parent=5 // pred_check_branch
        %577 = sbr.rel (%p575) target = $region48
      $region47: #{conv_stem_forward.4} parent=5 // pred_region
        %s578 = ssub.s32 %s20, 2
        // Predicated region
        $region49: #{conv_stem_forward.4} parent=47 // pred_check
          %p579 = pneg %p110
        $region50: #{conv_stem_forward.4} parent=47 // pred_check_branch
          %581 = sbr.rel (%p579) target = $region52
        $region51: #{conv_stem_forward.4} parent=47 // pred_region
          %s582 = sand.u32 %s95, 1
          %s583 = scalar_lea.sflag [#allocation5], %s582
          %s584 = sand.u32 %s95, 1
          %s585 = smul.addr %s584, 8
          %s586 = scalar_lea.vmem [#allocation8], %s585
          %587 = dma.done %s583, 128
        $region52: #{conv_stem_forward.4} parent=47 // pred_fallthru
          _
        // Predicated region
        $region53: #{conv_stem_forward.4} parent=47 // pred_check
          %p588 = pneg %p138
        $region54: #{conv_stem_forward.4} parent=47 // pred_check_branch
          %590 = sbr.rel (%p588) target = $region56
        $region55: #{conv_stem_forward.4} parent=47 // pred_region
          %s591 = sand.u32 %s123, 1
          %s592 = scalar_lea.sflag [#allocation10], %s591
          %s593 = sand.u32 %s123, 1
          %s594 = smul.addr %s593, 2
          %s595 = scalar_lea.vmem [#allocation9], %s594
          %596 = dma.done %s592, 32
        $region56: #{conv_stem_forward.4} parent=47 // pred_fallthru
          _
      $region48: #{conv_stem_forward.4} parent=5 // pred_fallthru
        _
    $region6: #{conv_stem_forward.4} parent=1 // loop_footer
      %s24 = sadd.s32 1, %s20
    $region7: #{conv_stem_forward.4} parent=1 // loop_footer_branch
      %19 = sbr.rel target = $region3
    $region8: #{conv_stem_forward.4} parent=1 // loop_exit
      _
    %597 = vsyncpa [#allocation4], 1
    %s598 = scalar_lea.sflag [#allocation4], 1
    %599 = vsyncpa %s598, 1
    %600 = vsyncpa [#allocation7], 1
    %601 = vsyncpa [#allocation5], 1
    %s602 = scalar_lea.sflag [#allocation5], 1
    %603 = vsyncpa %s602, 1
    %604 = vsyncpa [#allocation10], 1
    %s605 = scalar_lea.sflag [#allocation10], 1
    %606 = vsyncpa %s605, 1

// kernel: conv_stem_forward.5
$region0: #{conv_stem_forward.5}
  #allocation0 [shape = 'u32[]', space=smem, size = 0x4, offset = 0x4, fixed_abs, tag = 'smem constant byte address 0x4 - core index']
  #allocation1 [shape = 'u32[144,128]{1,0:T(1,128)}', space=vmem, size = 0x12000, scoped, tag = 'internal scratch']
  %s0 = inlined_call_operand.hbm [shape: bf16[32,8], index: 0, kind: input, shape index: {}]
  %s1 = inlined_call_operand.hbm [shape: f32[1,8], index: 1, kind: input, shape index: {}]
  %s2 = inlined_call_operand.hbm [shape: f32[1,8], index: 2, kind: input, shape index: {}]
  %s3 = inlined_call_operand.hbm [shape: bf16[8,32], index: 3, kind: input, shape index: {}]
  %s4 = inlined_call_operand.hbm [shape: f32[1,32], index: 4, kind: input, shape index: {}]
  %s5 = inlined_call_operand.hbm [shape: f32[32,32], index: 5, kind: output, shape index: {}]
  %s6 = sld [smem:[#allocation0]]
  $region50: #{conv_stem_forward.5} parent=0
    _
  %s8 = ssub.s32 1, %s6
  %s9 = scalar_select 0, %s8, %s6
  $region1: #{conv_stem_forward.5} parent=0
    #allocation2 [shape = 'u8[8192]{0}', space=vmem, size = 0x2000, scoped, tag = 'input window, operand 0, single buffered']
    #allocation3 [shape = 's32[1]{0}', space=sflag, size = 0x4, scoped, tag = 'scoped memory for conv_stem_forward.5']
    #allocation4 [shape = 's32[1]{0}', space=sflag, size = 0x4, scoped, tag = 'scoped memory for conv_stem_forward.5']
    #allocation5 [shape = 'u8[512]{0}', space=vmem, size = 0x400, scoped, tag = 'input window, operand 1, single buffered']
    #allocation6 [shape = 's32[1]{0}', space=sflag, size = 0x4, scoped, tag = 'scoped memory for conv_stem_forward.5']
    #allocation7 [shape = 'u8[512]{0}', space=vmem, size = 0x400, scoped, tag = 'input window, operand 2, single buffered']
    #allocation8 [shape = 'u8[2048]{0}', space=vmem, size = 0x800, scoped, tag = 'input window, operand 3, single buffered']
    #allocation9 [shape = 's32[1]{0}', space=sflag, size = 0x4, scoped, tag = 'scoped memory for conv_stem_forward.5']
    #allocation10 [shape = 'u8[512]{0}', space=vmem, size = 0x400, scoped, tag = 'input window, operand 4, single buffered']
    #allocation11 [shape = 'u8[16384]{0}', space=vmem, size = 0x4000, scoped, tag = 'output window, operand 0, single buffered']
    %10 = vsyncpa [#allocation3], 0
    %11 = vsyncpa [#allocation6], 0
    %12 = vsyncpa [#allocation9], 0
    %13 = vsyncpa [#allocation4], 0
    // Predicated region
    $region2: #{conv_stem_forward.5} parent=1 // pred_check
      _
    $region3: #{conv_stem_forward.5} parent=1 // pred_check_branch
      %15 = sbr.rel (0) target = $region5
    $region4: #{conv_stem_forward.5} parent=1 // pred_region
      %s17 = ssub.s32 256, 256
      %18 = vsyncadd [#allocation3], %s17
      %s19 = sshll.u32 [#allocation2], 4
      %s20 = int_to_ptr.vmem [resolvable:$true] %s19
      %25 = dma.hbm_to_vmem [thread:$0]  %s0, 256, %s20, [#allocation3], 64, 64, 4
    $region5: #{conv_stem_forward.5} parent=1 // pred_fallthru
      _
    // Predicated region
    $region6: #{conv_stem_forward.5} parent=1 // pred_check
      _
    $region7: #{conv_stem_forward.5} parent=1 // pred_check_branch
      %27 = sbr.rel (0) target = $region9
    $region8: #{conv_stem_forward.5} parent=1 // pred_region
      %s29 = ssub.s32 16, 16
      %30 = vsyncadd [#allocation6], %s29
      %s32 = sshll.u32 [#allocation5], 4
      %s33 = int_to_ptr.vmem [resolvable:$true] %s32
      %35 = dma.hbm_to_vmem [thread:$0]  %s1, 16, %s33, [#allocation6]
    $region9: #{conv_stem_forward.5} parent=1 // pred_fallthru
      _
    // Predicated region
    $region10: #{conv_stem_forward.5} parent=1 // pred_check
      _
    $region11: #{conv_stem_forward.5} parent=1 // pred_check_branch
      %37 = sbr.rel (0) target = $region13
    $region12: #{conv_stem_forward.5} parent=1 // pred_region
      %s39 = ssub.s32 16, 16
      %40 = vsyncadd [#allocation6], %s39
      %s42 = sshll.u32 [#allocation7], 4
      %s43 = int_to_ptr.vmem [resolvable:$true] %s42
      %45 = dma.hbm_to_vmem [thread:$0]  %s2, 16, %s43, [#allocation6]
    $region13: #{conv_stem_forward.5} parent=1 // pred_fallthru
      _
    // Predicated region
    $region14: #{conv_stem_forward.5} parent=1 // pred_check
      _
    $region15: #{conv_stem_forward.5} parent=1 // pred_check_branch
      %47 = sbr.rel (0) target = $region17
    $region16: #{conv_stem_forward.5} parent=1 // pred_region
      %s49 = ssub.s32 64, 64
      %50 = vsyncadd [#allocation9], %s49
      %s52 = sshll.u32 [#allocation8], 4
      %s53 = int_to_ptr.vmem [resolvable:$true] %s52
      %55 = dma.hbm_to_vmem [thread:$0]  %s3, 64, %s53, [#allocation9]
    $region17: #{conv_stem_forward.5} parent=1 // pred_fallthru
      _
    // Predicated region
    $region18: #{conv_stem_forward.5} parent=1 // pred_check
      _
    $region19: #{conv_stem_forward.5} parent=1 // pred_check_branch
      %57 = sbr.rel (0) target = $region21
    $region20: #{conv_stem_forward.5} parent=1 // pred_region
      %s59 = ssub.s32 16, 16
      %60 = vsyncadd [#allocation9], %s59
      %s62 = sshll.u32 [#allocation10], 4
      %s63 = int_to_ptr.vmem [resolvable:$true] %s62
      %65 = dma.hbm_to_vmem [thread:$0]  %s4, 16, %s63, [#allocation9]
    $region21: #{conv_stem_forward.5} parent=1 // pred_fallthru
      _
    // Predicated region
    $region22: #{conv_stem_forward.5} parent=1 // pred_check
      _
    $region23: #{conv_stem_forward.5} parent=1 // pred_check_branch
      %67 = sbr.rel (0) target = $region25
    $region24: #{conv_stem_forward.5} parent=1 // pred_region
      %68 = dma.done [#allocation3], 256
    $region25: #{conv_stem_forward.5} parent=1 // pred_fallthru
      _
    // Predicated region
    $region26: #{conv_stem_forward.5} parent=1 // pred_check
      _
    $region27: #{conv_stem_forward.5} parent=1 // pred_check_branch
      %70 = sbr.rel (0) target = $region29
    $region28: #{conv_stem_forward.5} parent=1 // pred_region
      %71 = dma.done [#allocation6], 16
    $region29: #{conv_stem_forward.5} parent=1 // pred_fallthru
      _
    // Predicated region
    $region30: #{conv_stem_forward.5} parent=1 // pred_check
      _
    $region31: #{conv_stem_forward.5} parent=1 // pred_check_branch
      %73 = sbr.rel (0) target = $region33
    $region32: #{conv_stem_forward.5} parent=1 // pred_region
      %74 = dma.done [#allocation6], 16
    $region33: #{conv_stem_forward.5} parent=1 // pred_fallthru
      _
    // Predicated region
    $region34: #{conv_stem_forward.5} parent=1 // pred_check
      _
    $region35: #{conv_stem_forward.5} parent=1 // pred_check_branch
      %76 = sbr.rel (0) target = $region37
    $region36: #{conv_stem_forward.5} parent=1 // pred_region
      %77 = dma.done [#allocation9], 64
    $region37: #{conv_stem_forward.5} parent=1 // pred_fallthru
      _
    // Predicated region
    $region38: #{conv_stem_forward.5} parent=1 // pred_check
      _
    $region39: #{conv_stem_forward.5} parent=1 // pred_check_branch
      %79 = sbr.rel (0) target = $region41
    $region40: #{conv_stem_forward.5} parent=1 // pred_region
      %80 = dma.done [#allocation9], 16
    $region41: #{conv_stem_forward.5} parent=1 // pred_fallthru
      _
    %v82 = vld [vmem:[#allocation2] sm:$0xf]
    %v83 = vld [vmem:[#allocation2 + $0x4] sm:$0xf]
    %v84 = vld [vmem:[#allocation2 + $0x8] sm:$0xf]
    %v85 = vld [vmem:[#allocation2 + $0xc] sm:$0xf]
    %v86 = vunpack.c.l.bf16 %v82
    %v87 = vunpack.c.l.bf16 %v83
    %v88 = vunpack.c.l.bf16 %v84
    %v89 = vunpack.c.l.bf16 %v85
    %v90 = vld [vmem:[#allocation5] sm:$0x1]
    %v92 = vlaneseq
    %v93 = vshrl.u32 %v92, 7
    %v94 = vsub.s32 0, %v93
    %v95 = vrot.slane %v90, %v94
    %v97 = vmul.f32 %v86, %v95
    %v98 = vmul.f32 %v87, %v95
    %v99 = vmul.f32 %v88, %v95
    %v100 = vmul.f32 %v89, %v95
    %v101 = vld [vmem:[#allocation7] sm:$0x1]
    %v103 = vlaneseq
    %v104 = vshrl.u32 %v103, 7
    %v105 = vsub.s32 0, %v104
    %v106 = vrot.slane %v101, %v105
    %v108 = vadd.f32 %v97, %v106
    %v109 = vadd.f32 %v98, %v106
    %v110 = vadd.f32 %v99, %v106
    %v111 = vadd.f32 %v100, %v106
    %v112 = vmax.f32 %v108, 0.0
    %v113 = vmax.f32 %v109, 0.0
    %v114 = vmax.f32 %v110, 0.0
    %v115 = vmax.f32 %v111, 0.0
    %v116 = vpack.c.bf16 %v113, %v112
    %v117 = vpack.c.bf16 %v115, %v114
    %v118 = vld [vmem:[#allocation8] sm:$0xf]
    %v119 = vld [vmem:[#allocation10] sm:$0x1]
    %v121 = vlaneseq
    %v122 = vshrl.u32 %v121, 7
    %v123 = vsub.s32 0, %v122
    %v124 = vrot.slane %v119, %v123
    %vm126 = vcmask 64512
    %v128 = vsel %vm126, %v116, 0
    %v131 = vsel %vm126, %v117, 0
    %vm133 = vcmask 1043456
    %v135 = vsel %vm133, %v118, 0
    %137 = vmatprep.subr.bf16.mxu0 0
    %138 = vmatpush1.bf16.msra.mxu0 %v135
    %139 = vmatprep.subr.bf16.mxu0 0
    %140 = vmatpush1.bf16.msra.mxu0 0
    %141 = vmatprep.subr.bf16.mxu0 0
    %142 = vmatpush1.bf16.msra.mxu0 0
    %143 = vmatprep.subr.bf16.mxu0 0
    %144 = vmatpush1.bf16.msra.mxu0 0
    %145 = vmatprep.subr.bf16.mxu0 0
    %146 = vmatpush1.bf16.msra.mxu0 0
    %147 = vmatprep.subr.bf16.mxu0 0
    %148 = vmatpush1.bf16.msra.mxu0 0
    %149 = vmatprep.subr.bf16.mxu0 0
    %150 = vmatpush1.bf16.msra.mxu0 0
    %151 = vmatprep.subr.bf16.mxu0 0
    %152 = vmatpush1.bf16.msra.mxu0 0
    %153 = vmatprep.subr.bf16.mxu0 0
    %154 = vmatpush1.bf16.msra.mxu0 0
    %155 = vmatprep.subr.bf16.mxu0 0
    %156 = vmatpush1.bf16.msra.mxu0 0
    %157 = vmatprep.subr.bf16.mxu0 0
    %158 = vmatpush1.bf16.msra.mxu0 0
    %159 = vmatprep.subr.bf16.mxu0 0
    %160 = vmatpush1.bf16.msra.mxu0 0
    %161 = vmatprep.subr.bf16.mxu0 0
    %162 = vmatpush1.bf16.msra.mxu0 0
    %163 = vmatprep.subr.bf16.mxu0 0
    %164 = vmatpush1.bf16.msra.mxu0 0
    %165 = vmatprep.subr.bf16.mxu0 0
    %166 = vmatpush1.bf16.msra.mxu0 0
    %167 = vmatprep.subr.bf16.mxu0 0
    %168 = vmatpush1.bf16.msra.mxu0 0
    %169 = vmatprep.mubr.bf16.mxu0 0
    %170 = vmatmul.mubr.bf16.gmra.mrb[0].mxu0 %v128
    %v171 = vpop.f32.mrb[0].mxu0
    %v172 = vadd.f32 %v124, %v171
    %v173 = vpop.f32.mrb[0].mxu0
    %v174 = vpop.f32.mrb[0].mxu0
    %v175 = vadd.f32 %v124, %v174
    %v176 = vpop.f32.mrb[0].mxu0
    %177 = vmatprep.mubr.bf16.mxu0 0
    %178 = vmatmul.mubr.bf16.gmra.mrb[0].mxu0 %v131
    %v179 = vpop.f32.mrb[0].mxu0
    %v180 = vadd.f32 %v124, %v179
    %v181 = vpop.f32.mrb[0].mxu0
    %v182 = vpop.f32.mrb[0].mxu0
    %v183 = vadd.f32 %v124, %v182
    %v184 = vpop.f32.mrb[0].mxu0
    %185 = vdwg.mxu0
    %vm186 = vcmask 261120
    %187 = vst.msk [vmem:[#allocation11] sm:$0xff] %vm186, %v172
    %188 = vst.msk [vmem:[#allocation11 + $0x8] sm:$0xff] %vm186, %v175
    %189 = vst.msk [vmem:[#allocation11 + $0x10] sm:$0xff] %vm186, %v180
    %190 = vst.msk [vmem:[#allocation11 + $0x18] sm:$0xff] %vm186, %v183
    // Predicated region
    $region42: #{conv_stem_forward.5} parent=1 // pred_check
      _
    $region43: #{conv_stem_forward.5} parent=1 // pred_check_branch
      %192 = sbr.rel (0) target = $region45
    $region44: #{conv_stem_forward.5} parent=1 // pred_region
      %s194 = ssub.s32 512, 512
      %195 = vsyncadd [#allocation4], %s194
      %s196 = sshll.u32 [#allocation11], 4
      %s197 = int_to_ptr.vmem [resolvable:$true] %s196
      %202 = dma.vmem_to_hbm [thread:$0]  %s197, 512, %s5, [#allocation4], 128, 128, 8
    $region45: #{conv_stem_forward.5} parent=1 // pred_fallthru
      _
    // Predicated region
    $region46: #{conv_stem_forward.5} parent=1 // pred_check
      _
    $region47: #{conv_stem_forward.5} parent=1 // pred_check_branch
      %204 = sbr.rel (0) target = $region49
    $region48: #{conv_stem_forward.5} parent=1 // pred_region
      %205 = dma.done [#allocation4], 512
    $region49: #{conv_stem_forward.5} parent=1 // pred_fallthru
      _
    %206 = vsyncpa [#allocation3], 1
    %207 = vsyncpa [#allocation6], 1
    %208 = vsyncpa [#allocation9], 1
    %209 = vsyncpa [#allocation4], 1

</llo_original>
